<compile_context>
chip_gen: v7x
topology: tpu7x:2x2x1
jax: 0.10.0
libtpu: 0.0.40
codegen_flags: <defaults>
</compile_context>

<pallas_src>
import functools

import jax
import jax.numpy as jnp
from jax.experimental import pallas as pl
from jax.experimental.pallas import tpu as pltpu

LN_EPS = 1e-5  # torch.nn.LayerNorm default


def _round_up(x, m):
    return ((x + m - 1) // m) * m


def _layernorm_padded(x, gamma, beta, n_real):
    """LayerNorm over the last axis where only the first n_real lanes are live.

    Requires the padded lanes of `x` to be exactly zero (guaranteed by the
    zero-padded weight columns / biases), so sum(x) and sum(x*x) over all lanes
    equal the sums over the real lanes.  gamma/beta are zero on padded lanes,
    which forces the padded output lanes back to zero.
    """
    inv_n = 1.0 / float(n_real)
    s1 = jnp.sum(x, axis=-1, keepdims=True)
    s2 = jnp.sum(x * x, axis=-1, keepdims=True)
    mu = s1 * inv_n
    var = s2 * inv_n - mu * mu          # biased variance, matches torch
    rstd = jax.lax.rsqrt(var + LN_EPS)
    return (x - mu) * rstd * gamma + beta


def actor_kernel(x_ref, w1_ref, w2_ref, w3_ref, vec_ref, out_ref, *, n1, n2):
    # vec_ref rows: 0=b1 1=g1 2=be1 3=b2 4=g2 5=be2 6=b3  (f32, lane-padded)
    x = x_ref[...]                                      # (B, SP) f32

    h1w = w1_ref.shape[1]
    h2w = w2_ref.shape[1]
    apw = w3_ref.shape[1]

    # fc1 -> LayerNorm -> ReLU
    w1 = w1_ref[...].astype(jnp.float32)                # bf16 storage, f32 math
    h = jnp.dot(x, w1, preferred_element_type=jnp.float32) + vec_ref[0:1, :h1w]
    h = _layernorm_padded(h, vec_ref[1:2, :h1w], vec_ref[2:3, :h1w], n1)
    h = jnp.maximum(h, 0.0)

    # fc2 -> LayerNorm -> ReLU
    w2 = w2_ref[...].astype(jnp.float32)
    h = jnp.dot(h, w2, preferred_element_type=jnp.float32) + vec_ref[3:4, :h2w]
    h = _layernorm_padded(h, vec_ref[4:5, :h2w], vec_ref[5:6, :h2w], n2)
    h = jnp.maximum(h, 0.0)

    # fc3 -> tanh  (padded output lanes stay 0 -> tanh(0)=0, sliced off outside)
    w3 = w3_ref[...].astype(jnp.float32)
    h = jnp.dot(h, w3, preferred_element_type=jnp.float32) + vec_ref[6:7, :apw]
    out_ref[...] = jnp.tanh(h)


def init_actor_params(key, sdim, adim, hidden1=400, hidden2=300):
    """Deterministic init mirroring Actor.__init__ (uniform ranges).

    Weights are stored transposed vs. PyTorch, i.e. (in_features, out_features).
    """
    k1, k2, k3, k4, k5, k6 = jax.random.split(key, 6)
    f1 = 1.0 / jnp.sqrt(jnp.float32(hidden1))
    w1 = jax.random.uniform(k1, (sdim, hidden1), jnp.float32, -f1, f1)
    b1 = jax.random.uniform(k2, (hidden1,), jnp.float32, -f1, f1)
    g1 = jnp.ones((hidden1,), jnp.float32)      # LayerNorm defaults
    be1 = jnp.zeros((hidden1,), jnp.float32)
    f2 = 1.0 / jnp.sqrt(jnp.float32(hidden2))
    w2 = jax.random.uniform(k3, (hidden1, hidden2), jnp.float32, -f2, f2)
    b2 = jax.random.uniform(k4, (hidden2,), jnp.float32, -f2, f2)
    g2 = jnp.ones((hidden2,), jnp.float32)
    be2 = jnp.zeros((hidden2,), jnp.float32)
    f3 = 0.003
    w3 = jax.random.uniform(k5, (hidden2, adim), jnp.float32, -f3, f3)
    b3 = jax.random.uniform(k6, (adim,), jnp.float32, -f3, f3)
    return (w1, b1, g1, be1, w2, b2, g2, be2, w3, b3)


def prepare_actor_params(params, sdim, adim, hidden1=400, hidden2=300):
    """One-time host-side packing: zero-pad to lane-dense shapes, cast weights
    to bf16, and pack all small vectors into a single (7, W) f32 slab."""
    (w1, b1, g1, be1, w2, b2, g2, be2, w3, b3) = params
    SP = _round_up(sdim, 128)
    H1P = _round_up(hidden1, 256)
    H2P = _round_up(hidden2, 256)
    AP = _round_up(adim, 128)
    VW = max(H1P, H2P, AP)

    def pad2(a, r, c):
        return jnp.pad(a, ((0, r - a.shape[0]), (0, c - a.shape[1])))

    def padrow(v, w):
        return jnp.pad(v.reshape(1, -1), ((0, 0), (0, w - v.shape[0])))

    w1p = pad2(w1, SP, H1P).astype(jnp.bfloat16)
    w2p = pad2(w2, H1P, H2P).astype(jnp.bfloat16)
    w3p = pad2(w3, H2P, AP).astype(jnp.bfloat16)
    vecs = jnp.concatenate(
        [padrow(b1, VW), padrow(g1, VW), padrow(be1, VW),
         padrow(b2, VW), padrow(g2, VW), padrow(be2, VW),
         padrow(b3, VW)], axis=0).astype(jnp.float32)      # (7, VW)
    return (w1p, w2p, w3p, vecs)


@functools.partial(jax.jit, static_argnames=("sdim", "adim", "hidden1", "hidden2"))
def actor_forward(state, packed, *, sdim, adim, hidden1=400, hidden2=300):
    w1p, w2p, w3p, vecs = packed
    B = state.shape[0]
    SP = w1p.shape[0]
    AP = w3p.shape[1]

    # Lane-pad the state features (zeros hit zero-padded weight rows).
    state_p = jnp.pad(state.astype(jnp.float32), ((0, 0), (0, SP - sdim)))

    kernel = functools.partial(actor_kernel, n1=hidden1, n2=hidden2)
    out = pl.pallas_call(
        kernel,
        out_shape=jax.ShapeDtypeStruct((B, AP), jnp.float32),
        # No grid: single invocation, whole-array VMEM blocks, no
        # double-buffering / pipeline prologue. Total footprint < 1 MiB.
        in_specs=[pl.BlockSpec(memory_space=pltpu.MemorySpace.VMEM)] * 5,
        out_specs=pl.BlockSpec(memory_space=pltpu.MemorySpace.VMEM),
    )(state_p, w1p, w2p, w3p, vecs)
    return out[:, :adim]


def actor_reference(state, params):
    """Pure-JAX reference (emulates the bf16 weight storage of the kernel)."""
    (w1, b1, g1, be1, w2, b2, g2, be2, w3, b3) = params
    q = lambda w: w.astype(jnp.bfloat16).astype(jnp.float32)
    dot = lambda a, b: jnp.dot(a, b, precision=jax.lax.Precision.HIGHEST,
                               preferred_element_type=jnp.float32)

    def ln(x, g, be):
        mu = jnp.mean(x, axis=-1, keepdims=True)
        var = jnp.mean((x - mu) ** 2, axis=-1, keepdims=True)
        return (x - mu) * jax.lax.rsqrt(var + LN_EPS) * g + be

    h = dot(state, q(w1)) + b1
    h = jnp.maximum(ln(h, g1, be1), 0.0)
    h = dot(h, q(w2)) + b2
    h = jnp.maximum(ln(h, g2, be2), 0.0)
    return jnp.tanh(dot(h, q(w3)) + b3)


if __name__ == "__main__":
    B, SDIM, ADIM = 8, 16, 8
    HIDDEN1, HIDDEN2 = 400, 300

    key = jax.random.PRNGKey(0)
    k_state, k_params = jax.random.split(key)
    state = jax.random.normal(k_state, (B, SDIM), jnp.float32)

    params = init_actor_params(k_params, SDIM, ADIM, HIDDEN1, HIDDEN2)
    packed = prepare_actor_params(params, SDIM, ADIM, HIDDEN1, HIDDEN2)

    out = actor_forward(state, packed, sdim=SDIM, adim=ADIM,
                        hidden1=HIDDEN1, hidden2=HIDDEN2)
    out = jax.block_until_ready(out)

    ref = actor_reference(state, params)
    assert out.shape == (B, ADIM)
    assert jnp.allclose(out, ref, atol=2e-3, rtol=2e-3), \
        float(jnp.max(jnp.abs(out - ref)))
    print("KERNEL_OK")
</pallas_src>

<mosaic_0001>
module attributes {stable_mosaic.version = 11 : i64} {
  func.func @actor_kernel(%arg0: memref<8x128xf32, #tpu.memory_space<vmem>>, %arg1: memref<128x512xbf16, #tpu.memory_space<vmem>>, %arg2: memref<512x512xbf16, #tpu.memory_space<vmem>>, %arg3: memref<512x128xbf16, #tpu.memory_space<vmem>>, %arg4: memref<7x512xf32, #tpu.memory_space<vmem>>, %arg5: memref<8x128xf32, #tpu.memory_space<vmem>>) attributes {dimension_semantics = [], scalar_prefetch = 0 : i64, scratch_operands = 0 : i64, tpu.core_type = #tpu.core_type<tc>} {
    %c0 = arith.constant 0 : index
    %c0_0 = arith.constant 0 : index
    %0 = vector.load %arg0[%c0, %c0_0] : memref<8x128xf32, #tpu.memory_space<vmem>>, vector<8x128xf32>
    %c0_1 = arith.constant 0 : index
    %c0_2 = arith.constant 0 : index
    %1 = vector.load %arg1[%c0_1, %c0_2] : memref<128x512xbf16, #tpu.memory_space<vmem>>, vector<128x512xbf16>
    %2 = arith.extf %1 : vector<128x512xbf16> to vector<128x512xf32>
    %cst = arith.constant dense<0.000000e+00> : vector<8x512xf32>
    %3 = tpu.matmul %0, %2, %cst {dimension_numbers = #tpu.dot_dimension_numbers<[1], [0], [0], [1], [0, 0, 1, 1], [], []>} : vector<8x128xf32>, vector<128x512xf32>, vector<8x512xf32> -> vector<8x512xf32>
    %c0_3 = arith.constant 0 : index
    %c0_4 = arith.constant 0 : index
    %4 = vector.load %arg4[%c0_3, %c0_4] : memref<7x512xf32, #tpu.memory_space<vmem>>, vector<1x512xf32>
    %5 = vector.broadcast %4 : vector<1x512xf32> to vector<8x512xf32>
    %6 = arith.addf %3, %5 : vector<8x512xf32>
    %c1 = arith.constant 1 : index
    %c0_5 = arith.constant 0 : index
    %7 = vector.load %arg4[%c1, %c0_5] : memref<7x512xf32, #tpu.memory_space<vmem>>, vector<1x512xf32>
    %c2 = arith.constant 2 : index
    %c0_6 = arith.constant 0 : index
    %8 = vector.load %arg4[%c2, %c0_6] : memref<7x512xf32, #tpu.memory_space<vmem>>, vector<1x512xf32>
    %cst_7 = arith.constant dense<0.000000e+00> : vector<8xf32>
    %9 = vector.multi_reduction <add>, %6, %cst_7 [1] : vector<8x512xf32> to vector<8xf32>
    %10 = vector.shape_cast %9 : vector<8xf32> to vector<8x1xf32>
    %11 = arith.mulf %6, %6 : vector<8x512xf32>
    %cst_8 = arith.constant dense<0.000000e+00> : vector<8xf32>
    %12 = vector.multi_reduction <add>, %11, %cst_8 [1] : vector<8x512xf32> to vector<8xf32>
    %13 = vector.shape_cast %12 : vector<8xf32> to vector<8x1xf32>
    %cst_9 = arith.constant 2.500000e-03 : f32
    %14 = vector.broadcast %cst_9 : f32 to vector<8x1xf32>
    %15 = arith.mulf %10, %14 : vector<8x1xf32>
    %cst_10 = arith.constant 2.500000e-03 : f32
    %16 = vector.broadcast %cst_10 : f32 to vector<8x1xf32>
    %17 = arith.mulf %13, %16 : vector<8x1xf32>
    %18 = arith.mulf %15, %15 : vector<8x1xf32>
    %19 = arith.subf %17, %18 : vector<8x1xf32>
    %cst_11 = arith.constant 9.99999974E-6 : f32
    %20 = vector.broadcast %cst_11 : f32 to vector<8x1xf32>
    %21 = arith.addf %19, %20 : vector<8x1xf32>
    %22 = math.rsqrt %21 : vector<8x1xf32>
    %23 = vector.broadcast %15 : vector<8x1xf32> to vector<8x512xf32>
    %24 = arith.subf %6, %23 : vector<8x512xf32>
    %25 = vector.broadcast %22 : vector<8x1xf32> to vector<8x512xf32>
    %26 = arith.mulf %24, %25 : vector<8x512xf32>
    %27 = vector.broadcast %7 : vector<1x512xf32> to vector<8x512xf32>
    %28 = arith.mulf %26, %27 : vector<8x512xf32>
    %29 = vector.broadcast %8 : vector<1x512xf32> to vector<8x512xf32>
    %30 = arith.addf %28, %29 : vector<8x512xf32>
    %cst_12 = arith.constant 0.000000e+00 : f32
    %31 = vector.broadcast %cst_12 : f32 to vector<8x512xf32>
    %32 = arith.maximumf %30, %31 : vector<8x512xf32>
    %c0_13 = arith.constant 0 : index
    %c0_14 = arith.constant 0 : index
    %33 = vector.load %arg2[%c0_13, %c0_14] : memref<512x512xbf16, #tpu.memory_space<vmem>>, vector<512x512xbf16>
    %34 = arith.extf %33 : vector<512x512xbf16> to vector<512x512xf32>
    %cst_15 = arith.constant dense<0.000000e+00> : vector<8x512xf32>
    %35 = tpu.matmul %32, %34, %cst_15 {dimension_numbers = #tpu.dot_dimension_numbers<[1], [0], [0], [1], [0, 0, 1, 1], [], []>} : vector<8x512xf32>, vector<512x512xf32>, vector<8x512xf32> -> vector<8x512xf32>
    %c3 = arith.constant 3 : index
    %c0_16 = arith.constant 0 : index
    %36 = vector.load %arg4[%c3, %c0_16] : memref<7x512xf32, #tpu.memory_space<vmem>>, vector<1x512xf32>
    %37 = vector.broadcast %36 : vector<1x512xf32> to vector<8x512xf32>
    %38 = arith.addf %35, %37 : vector<8x512xf32>
    %c4 = arith.constant 4 : index
    %c0_17 = arith.constant 0 : index
    %39 = vector.load %arg4[%c4, %c0_17] : memref<7x512xf32, #tpu.memory_space<vmem>>, vector<1x512xf32>
    %c5 = arith.constant 5 : index
    %c0_18 = arith.constant 0 : index
    %40 = vector.load %arg4[%c5, %c0_18] : memref<7x512xf32, #tpu.memory_space<vmem>>, vector<1x512xf32>
    %cst_19 = arith.constant dense<0.000000e+00> : vector<8xf32>
    %41 = vector.multi_reduction <add>, %38, %cst_19 [1] : vector<8x512xf32> to vector<8xf32>
    %42 = vector.shape_cast %41 : vector<8xf32> to vector<8x1xf32>
    %43 = arith.mulf %38, %38 : vector<8x512xf32>
    %cst_20 = arith.constant dense<0.000000e+00> : vector<8xf32>
    %44 = vector.multi_reduction <add>, %43, %cst_20 [1] : vector<8x512xf32> to vector<8xf32>
    %45 = vector.shape_cast %44 : vector<8xf32> to vector<8x1xf32>
    %cst_21 = arith.constant 0.00333333341 : f32
    %46 = vector.broadcast %cst_21 : f32 to vector<8x1xf32>
    %47 = arith.mulf %42, %46 : vector<8x1xf32>
    %cst_22 = arith.constant 0.00333333341 : f32
    %48 = vector.broadcast %cst_22 : f32 to vector<8x1xf32>
    %49 = arith.mulf %45, %48 : vector<8x1xf32>
    %50 = arith.mulf %47, %47 : vector<8x1xf32>
    %51 = arith.subf %49, %50 : vector<8x1xf32>
    %cst_23 = arith.constant 9.99999974E-6 : f32
    %52 = vector.broadcast %cst_23 : f32 to vector<8x1xf32>
    %53 = arith.addf %51, %52 : vector<8x1xf32>
    %54 = math.rsqrt %53 : vector<8x1xf32>
    %55 = vector.broadcast %47 : vector<8x1xf32> to vector<8x512xf32>
    %56 = arith.subf %38, %55 : vector<8x512xf32>
    %57 = vector.broadcast %54 : vector<8x1xf32> to vector<8x512xf32>
    %58 = arith.mulf %56, %57 : vector<8x512xf32>
    %59 = vector.broadcast %39 : vector<1x512xf32> to vector<8x512xf32>
    %60 = arith.mulf %58, %59 : vector<8x512xf32>
    %61 = vector.broadcast %40 : vector<1x512xf32> to vector<8x512xf32>
    %62 = arith.addf %60, %61 : vector<8x512xf32>
    %cst_24 = arith.constant 0.000000e+00 : f32
    %63 = vector.broadcast %cst_24 : f32 to vector<8x512xf32>
    %64 = arith.maximumf %62, %63 : vector<8x512xf32>
    %c0_25 = arith.constant 0 : index
    %c0_26 = arith.constant 0 : index
    %65 = vector.load %arg3[%c0_25, %c0_26] : memref<512x128xbf16, #tpu.memory_space<vmem>>, vector<512x128xbf16>
    %66 = arith.extf %65 : vector<512x128xbf16> to vector<512x128xf32>
    %cst_27 = arith.constant dense<0.000000e+00> : vector<8x128xf32>
    %67 = tpu.matmul %64, %66, %cst_27 {dimension_numbers = #tpu.dot_dimension_numbers<[1], [0], [0], [1], [0, 0, 1, 1], [], []>} : vector<8x512xf32>, vector<512x128xf32>, vector<8x128xf32> -> vector<8x128xf32>
    %c6 = arith.constant 6 : index
    %c0_28 = arith.constant 0 : index
    %68 = vector.load %arg4[%c6, %c0_28] : memref<7x512xf32, #tpu.memory_space<vmem>>, vector<1x128xf32>
    %69 = vector.broadcast %68 : vector<1x128xf32> to vector<8x128xf32>
    %70 = arith.addf %67, %69 : vector<8x128xf32>
    %71 = math.tanh %70 : vector<8x128xf32>
    %c0_29 = arith.constant 0 : index
    %c0_30 = arith.constant 0 : index
    %72 = vector.load %arg5[%c0_29, %c0_30] : memref<8x128xf32, #tpu.memory_space<vmem>>, vector<8x128xf32>
    tpu.vector_store %arg5[%c0_29, %c0_30], %71 {strides = array<i32>} : memref<8x128xf32, #tpu.memory_space<vmem>>, vector<8x128xf32>,
    return
  }
}

</mosaic_0001>

<llo_original>
// kernel: actor_forward.1
$region0: #{actor_forward.1}
  #allocation0 [shape = 'u32[]', space=smem, size = 0x4, offset = 0x4, fixed_abs, tag = 'smem constant byte address 0x4 - core index']
  #allocation1 [shape = 'u32[144,128]{1,0:T(1,128)}', space=vmem, size = 0x12000, scoped, tag = 'internal scratch']
  %s0 = inlined_call_operand.vmem [shape: f32[8,128], index: 0, kind: input, shape index: {}]
  %s1 = inlined_call_operand.hbm [shape: bf16[128,512], index: 1, kind: input, shape index: {}]
  %s2 = inlined_call_operand.hbm [shape: bf16[512,512], index: 2, kind: input, shape index: {}]
  %s3 = inlined_call_operand.hbm [shape: bf16[512,128], index: 3, kind: input, shape index: {}]
  %s4 = inlined_call_operand.vmem [shape: f32[7,512], index: 4, kind: input, shape index: {}]
  %s5 = inlined_call_operand.hbm [shape: f32[8,128], index: 5, kind: output, shape index: {}]
  %s6 = sld [smem:[#allocation0]]
  $region42: #{actor_forward.1} parent=0
    _
  %s8 = ssub.s32 1, %s6
  %s9 = scalar_select 0, %s8, %s6
  $region1: #{actor_forward.1} parent=0
    #allocation2 [shape = 'u8[131072]{0}', space=vmem, size = 0x20000, scoped, tag = 'input window, operand 1, single buffered']
    #allocation3 [shape = 's32[1]{0}', space=sflag, size = 0x4, scoped, tag = 'scoped memory for actor_forward.1']
    #allocation4 [shape = 's32[1]{0}', space=sflag, size = 0x4, scoped, tag = 'scoped memory for actor_forward.1']
    #allocation5 [shape = 'u8[524288]{0}', space=vmem, size = 0x80000, scoped, tag = 'input window, operand 2, single buffered']
    #allocation6 [shape = 's32[1]{0}', space=sflag, size = 0x4, scoped, tag = 'scoped memory for actor_forward.1']
    #allocation7 [shape = 'u8[131072]{0}', space=vmem, size = 0x20000, scoped, tag = 'input window, operand 3, single buffered']
    #allocation8 [shape = 'u8[4096]{0}', space=vmem, size = 0x1000, scoped, tag = 'output window, operand 0, single buffered']
    %10 = vsyncpa [#allocation3], 0
    %11 = vsyncpa [#allocation6], 0
    %12 = vsyncpa [#allocation4], 0
    // Predicated region
    $region2: #{actor_forward.1} parent=1 // pred_check
      _
    $region3: #{actor_forward.1} parent=1 // pred_check_branch
      %14 = sbr.rel (0) target = $region5
    $region4: #{actor_forward.1} parent=1 // pred_region
      _
    $region5: #{actor_forward.1} parent=1 // pred_fallthru
      _
    // Predicated region
    $region6: #{actor_forward.1} parent=1 // pred_check
      _
    $region7: #{actor_forward.1} parent=1 // pred_check_branch
      %16 = sbr.rel (0) target = $region9
    $region8: #{actor_forward.1} parent=1 // pred_region
      %s18 = ssub.s32 4096, 4096
      %19 = vsyncadd [#allocation3], %s18
      %s20 = sshll.u32 [#allocation2], 4
      %s21 = int_to_ptr.vmem [resolvable:$true] %s20
      %26 = dma.hbm_to_vmem [thread:$0]  %s1, 4096, %s21, [#allocation3], 256, 256, 16
    $region9: #{actor_forward.1} parent=1 // pred_fallthru
      _
    // Predicated region
    $region10: #{actor_forward.1} parent=1 // pred_check
      _
    $region11: #{actor_forward.1} parent=1 // pred_check_branch
      %28 = sbr.rel (0) target = $region13
    $region12: #{actor_forward.1} parent=1 // pred_region
      %s30 = ssub.s32 16384, 16384
      %31 = vsyncadd [#allocation6], %s30
      %s32 = sshll.u32 [#allocation5], 4
      %s33 = int_to_ptr.vmem [resolvable:$true] %s32
      %38 = dma.hbm_to_vmem [thread:$0]  %s2, 16384, %s33, [#allocation6], 256, 256, 16
    $region13: #{actor_forward.1} parent=1 // pred_fallthru
      _
    // Predicated region
    $region14: #{actor_forward.1} parent=1 // pred_check
      _
    $region15: #{actor_forward.1} parent=1 // pred_check_branch
      %40 = sbr.rel (0) target = $region17
    $region16: #{actor_forward.1} parent=1 // pred_region
      %s42 = ssub.s32 4096, 4096
      %43 = vsyncadd [#allocation6], %s42
      %s44 = sshll.u32 [#allocation7], 4
      %s45 = int_to_ptr.vmem [resolvable:$true] %s44
      %50 = dma.hbm_to_vmem [thread:$0]  %s3, 4096, %s45, [#allocation6], 64, 64, 4
    $region17: #{actor_forward.1} parent=1 // pred_fallthru
      _
    // Predicated region
    $region18: #{actor_forward.1} parent=1 // pred_check
      _
    $region19: #{actor_forward.1} parent=1 // pred_check_branch
      %52 = sbr.rel (0) target = $region21
    $region20: #{actor_forward.1} parent=1 // pred_region
      _
    $region21: #{actor_forward.1} parent=1 // pred_fallthru
      _
    // Predicated region
    $region22: #{actor_forward.1} parent=1 // pred_check
      _
    $region23: #{actor_forward.1} parent=1 // pred_check_branch
      %54 = sbr.rel (0) target = $region25
    $region24: #{actor_forward.1} parent=1 // pred_region
      %55 = dma.done [#allocation3], 4096
    $region25: #{actor_forward.1} parent=1 // pred_fallthru
      _
    // Predicated region
    $region26: #{actor_forward.1} parent=1 // pred_check
      _
    $region27: #{actor_forward.1} parent=1 // pred_check_branch
      %57 = sbr.rel (0) target = $region29
    $region28: #{actor_forward.1} parent=1 // pred_region
      %58 = dma.done [#allocation6], 16384
    $region29: #{actor_forward.1} parent=1 // pred_fallthru
      _
    // Predicated region
    $region30: #{actor_forward.1} parent=1 // pred_check
      _
    $region31: #{actor_forward.1} parent=1 // pred_check_branch
      %60 = sbr.rel (0) target = $region33
    $region32: #{actor_forward.1} parent=1 // pred_region
      %61 = dma.done [#allocation6], 4096
    $region33: #{actor_forward.1} parent=1 // pred_fallthru
      _
    %v62 = vld [vmem:[%s0] sm:$0xff]
    %v63 = vld [vmem:[#allocation2] sm:$0xff]
    %v64 = vld [vmem:[#allocation2 + $0x8] sm:$0xff]
    %v65 = vld [vmem:[#allocation2 + $0x10] sm:$0xff]
    %v66 = vld [vmem:[#allocation2 + $0x18] sm:$0xff]
    %v67 = vld [vmem:[#allocation2 + $0x20] sm:$0xff]
    %v68 = vld [vmem:[#allocation2 + $0x28] sm:$0xff]
    %v69 = vld [vmem:[#allocation2 + $0x30] sm:$0xff]
    %v70 = vld [vmem:[#allocation2 + $0x38] sm:$0xff]
    %v71 = vld [vmem:[#allocation2 + $0x40] sm:$0xff]
    %v72 = vld [vmem:[#allocation2 + $0x48] sm:$0xff]
    %v73 = vld [vmem:[#allocation2 + $0x50] sm:$0xff]
    %v74 = vld [vmem:[#allocation2 + $0x58] sm:$0xff]
    %v75 = vld [vmem:[#allocation2 + $0x60] sm:$0xff]
    %v76 = vld [vmem:[#allocation2 + $0x68] sm:$0xff]
    %v77 = vld [vmem:[#allocation2 + $0x70] sm:$0xff]
    %v78 = vld [vmem:[#allocation2 + $0x78] sm:$0xff]
    %v79 = vld [vmem:[#allocation2 + $0x80] sm:$0xff]
    %v80 = vld [vmem:[#allocation2 + $0x88] sm:$0xff]
    %v81 = vld [vmem:[#allocation2 + $0x90] sm:$0xff]
    %v82 = vld [vmem:[#allocation2 + $0x98] sm:$0xff]
    %v83 = vld [vmem:[#allocation2 + $0xa0] sm:$0xff]
    %v84 = vld [vmem:[#allocation2 + $0xa8] sm:$0xff]
    %v85 = vld [vmem:[#allocation2 + $0xb0] sm:$0xff]
    %v86 = vld [vmem:[#allocation2 + $0xb8] sm:$0xff]
    %v87 = vld [vmem:[#allocation2 + $0xc0] sm:$0xff]
    %v88 = vld [vmem:[#allocation2 + $0xc8] sm:$0xff]
    %v89 = vld [vmem:[#allocation2 + $0xd0] sm:$0xff]
    %v90 = vld [vmem:[#allocation2 + $0xd8] sm:$0xff]
    %v91 = vld [vmem:[#allocation2 + $0xe0] sm:$0xff]
    %v92 = vld [vmem:[#allocation2 + $0xe8] sm:$0xff]
    %v93 = vld [vmem:[#allocation2 + $0xf0] sm:$0xff]
    %v94 = vld [vmem:[#allocation2 + $0xf8] sm:$0xff]
    %v95 = vunpack.c.l.bf16 %v63
    %v96 = vunpack.c.h.bf16 %v63
    %v97 = vunpack.c.l.bf16 %v64
    %v98 = vunpack.c.h.bf16 %v64
    %v99 = vunpack.c.l.bf16 %v65
    %v100 = vunpack.c.h.bf16 %v65
    %v101 = vunpack.c.l.bf16 %v66
    %v102 = vunpack.c.h.bf16 %v66
    %v103 = vunpack.c.l.bf16 %v67
    %v104 = vunpack.c.h.bf16 %v67
    %v105 = vunpack.c.l.bf16 %v68
    %v106 = vunpack.c.h.bf16 %v68
    %v107 = vunpack.c.l.bf16 %v69
    %v108 = vunpack.c.h.bf16 %v69
    %v109 = vunpack.c.l.bf16 %v70
    %v110 = vunpack.c.h.bf16 %v70
    %v111 = vunpack.c.l.bf16 %v71
    %v112 = vunpack.c.h.bf16 %v71
    %v113 = vunpack.c.l.bf16 %v72
    %v114 = vunpack.c.h.bf16 %v72
    %v115 = vunpack.c.l.bf16 %v73
    %v116 = vunpack.c.h.bf16 %v73
    %v117 = vunpack.c.l.bf16 %v74
    %v118 = vunpack.c.h.bf16 %v74
    %v119 = vunpack.c.l.bf16 %v75
    %v120 = vunpack.c.h.bf16 %v75
    %v121 = vunpack.c.l.bf16 %v76
    %v122 = vunpack.c.h.bf16 %v76
    %v123 = vunpack.c.l.bf16 %v77
    %v124 = vunpack.c.h.bf16 %v77
    %v125 = vunpack.c.l.bf16 %v78
    %v126 = vunpack.c.h.bf16 %v78
    %v127 = vunpack.c.l.bf16 %v79
    %v128 = vunpack.c.h.bf16 %v79
    %v129 = vunpack.c.l.bf16 %v80
    %v130 = vunpack.c.h.bf16 %v80
    %v131 = vunpack.c.l.bf16 %v81
    %v132 = vunpack.c.h.bf16 %v81
    %v133 = vunpack.c.l.bf16 %v82
    %v134 = vunpack.c.h.bf16 %v82
    %v135 = vunpack.c.l.bf16 %v83
    %v136 = vunpack.c.h.bf16 %v83
    %v137 = vunpack.c.l.bf16 %v84
    %v138 = vunpack.c.h.bf16 %v84
    %v139 = vunpack.c.l.bf16 %v85
    %v140 = vunpack.c.h.bf16 %v85
    %v141 = vunpack.c.l.bf16 %v86
    %v142 = vunpack.c.h.bf16 %v86
    %v143 = vunpack.c.l.bf16 %v87
    %v144 = vunpack.c.h.bf16 %v87
    %v145 = vunpack.c.l.bf16 %v88
    %v146 = vunpack.c.h.bf16 %v88
    %v147 = vunpack.c.l.bf16 %v89
    %v148 = vunpack.c.h.bf16 %v89
    %v149 = vunpack.c.l.bf16 %v90
    %v150 = vunpack.c.h.bf16 %v90
    %v151 = vunpack.c.l.bf16 %v91
    %v152 = vunpack.c.h.bf16 %v91
    %v153 = vunpack.c.l.bf16 %v92
    %v154 = vunpack.c.h.bf16 %v92
    %v155 = vunpack.c.l.bf16 %v93
    %v156 = vunpack.c.h.bf16 %v93
    %v157 = vunpack.c.l.bf16 %v94
    %v158 = vunpack.c.h.bf16 %v94
    %v159 = vld [vmem:[%s4] ss:$8 sm:$0xf]
    %v161 = vlaneseq
    %v162 = vshrl.u32 %v161, 7
    %v163 = vsub.s32 0, %v162
    %v164 = vrot.slane %v159, %v163
    %v165 = vlaneseq
    %v166 = vshrl.u32 %v165, 7
    %v167 = vsub.s32 1, %v166
    %v168 = vrot.slane %v159, %v167
    %v169 = vlaneseq
    %v170 = vshrl.u32 %v169, 7
    %v171 = vsub.s32 2, %v170
    %v172 = vrot.slane %v159, %v171
    %v173 = vlaneseq
    %v174 = vshrl.u32 %v173, 7
    %v175 = vsub.s32 3, %v174
    %v176 = vrot.slane %v159, %v175
    %181 = vmatprep.subr.mxu0 %v96
    %182 = vmatpush1.msra.mxu0 %v95
    %183 = vmatprep.subr.mxu0 %v100
    %184 = vmatpush1.msra.mxu0 %v99
    %185 = vmatprep.subr.mxu0 %v104
    %186 = vmatpush1.msra.mxu0 %v103
    %187 = vmatprep.subr.mxu0 %v108
    %188 = vmatpush1.msra.mxu0 %v107
    %189 = vmatprep.subr.mxu0 %v112
    %190 = vmatpush1.msra.mxu0 %v111
    %191 = vmatprep.subr.mxu0 %v116
    %192 = vmatpush1.msra.mxu0 %v115
    %193 = vmatprep.subr.mxu0 %v120
    %194 = vmatpush1.msra.mxu0 %v119
    %195 = vmatprep.subr.mxu0 %v124
    %196 = vmatpush1.msra.mxu0 %v123
    %197 = vmatprep.subr.mxu0 %v128
    %198 = vmatpush1.msra.mxu0 %v127
    %199 = vmatprep.subr.mxu0 %v132
    %200 = vmatpush1.msra.mxu0 %v131
    %201 = vmatprep.subr.mxu0 %v136
    %202 = vmatpush1.msra.mxu0 %v135
    %203 = vmatprep.subr.mxu0 %v140
    %204 = vmatpush1.msra.mxu0 %v139
    %205 = vmatprep.subr.mxu0 %v144
    %206 = vmatpush1.msra.mxu0 %v143
    %207 = vmatprep.subr.mxu0 %v148
    %208 = vmatpush1.msra.mxu0 %v147
    %209 = vmatprep.subr.mxu0 %v152
    %210 = vmatpush1.msra.mxu0 %v151
    %211 = vmatprep.subr.mxu0 %v156
    %212 = vmatpush1.msra.mxu0 %v155
    %213 = vmatprep.subr.mxu0 0.0
    %214 = vmatpush1.msra.mxu0 0.0
    %215 = vmatprep.subr.mxu0 0.0
    %216 = vmatpush1.msra.mxu0 0.0
    %217 = vmatprep.subr.mxu0 0.0
    %218 = vmatpush1.msra.mxu0 0.0
    %219 = vmatprep.subr.mxu0 0.0
    %220 = vmatpush1.msra.mxu0 0.0
    %221 = vmatprep.subr.mxu0 0.0
    %222 = vmatpush1.msra.mxu0 0.0
    %223 = vmatprep.subr.mxu0 0.0
    %224 = vmatpush1.msra.mxu0 0.0
    %225 = vmatprep.subr.mxu0 0.0
    %226 = vmatpush1.msra.mxu0 0.0
    %227 = vmatprep.subr.mxu0 0.0
    %228 = vmatpush1.msra.mxu0 0.0
    %229 = vmatprep.subr.mxu0 0.0
    %230 = vmatpush1.msra.mxu0 0.0
    %231 = vmatprep.subr.mxu0 0.0
    %232 = vmatpush1.msra.mxu0 0.0
    %233 = vmatprep.subr.mxu0 0.0
    %234 = vmatpush1.msra.mxu0 0.0
    %235 = vmatprep.subr.mxu0 0.0
    %236 = vmatpush1.msra.mxu0 0.0
    %237 = vmatprep.subr.mxu0 0.0
    %238 = vmatpush1.msra.mxu0 0.0
    %239 = vmatprep.subr.mxu0 0.0
    %240 = vmatpush1.msra.mxu0 0.0
    %241 = vmatprep.subr.mxu0 0.0
    %242 = vmatpush1.msra.mxu0 0.0
    %243 = vmatprep.subr.mxu0 0.0
    %244 = vmatpush1.msra.mxu0 0.0
    %245 = vmatprep.mubr.f32.mxu0 0.0
    %246 = vmatmul.mubr.f32.gmra.mrb[0].mxu0 %v62
    %v247 = vpop.f32.mrb[0].mxu0
    %v248 = vadd.f32 %v164, %v247
    %v249 = vpop.f32.mrb[0].mxu0
    %v250 = vadd.f32 %v168, %v249
    %251 = vdwg.mxu0
    %252 = vmatprep.subr.mxu0 %v98
    %253 = vmatpush1.msra.mxu0 %v97
    %254 = vmatprep.subr.mxu0 %v102
    %255 = vmatpush1.msra.mxu0 %v101
    %256 = vmatprep.subr.mxu0 %v106
    %257 = vmatpush1.msra.mxu0 %v105
    %258 = vmatprep.subr.mxu0 %v110
    %259 = vmatpush1.msra.mxu0 %v109
    %260 = vmatprep.subr.mxu0 %v114
    %261 = vmatpush1.msra.mxu0 %v113
    %262 = vmatprep.subr.mxu0 %v118
    %263 = vmatpush1.msra.mxu0 %v117
    %264 = vmatprep.subr.mxu0 %v122
    %265 = vmatpush1.msra.mxu0 %v121
    %266 = vmatprep.subr.mxu0 %v126
    %267 = vmatpush1.msra.mxu0 %v125
    %268 = vmatprep.subr.mxu0 %v130
    %269 = vmatpush1.msra.mxu0 %v129
    %270 = vmatprep.subr.mxu0 %v134
    %271 = vmatpush1.msra.mxu0 %v133
    %272 = vmatprep.subr.mxu0 %v138
    %273 = vmatpush1.msra.mxu0 %v137
    %274 = vmatprep.subr.mxu0 %v142
    %275 = vmatpush1.msra.mxu0 %v141
    %276 = vmatprep.subr.mxu0 %v146
    %277 = vmatpush1.msra.mxu0 %v145
    %278 = vmatprep.subr.mxu0 %v150
    %279 = vmatpush1.msra.mxu0 %v149
    %280 = vmatprep.subr.mxu0 %v154
    %281 = vmatpush1.msra.mxu0 %v153
    %282 = vmatprep.subr.mxu0 %v158
    %283 = vmatpush1.msra.mxu0 %v157
    %284 = vmatprep.subr.mxu0 0.0
    %285 = vmatpush1.msra.mxu0 0.0
    %286 = vmatprep.subr.mxu0 0.0
    %287 = vmatpush1.msra.mxu0 0.0
    %288 = vmatprep.subr.mxu0 0.0
    %289 = vmatpush1.msra.mxu0 0.0
    %290 = vmatprep.subr.mxu0 0.0
    %291 = vmatpush1.msra.mxu0 0.0
    %292 = vmatprep.subr.mxu0 0.0
    %293 = vmatpush1.msra.mxu0 0.0
    %294 = vmatprep.subr.mxu0 0.0
    %295 = vmatpush1.msra.mxu0 0.0
    %296 = vmatprep.subr.mxu0 0.0
    %297 = vmatpush1.msra.mxu0 0.0
    %298 = vmatprep.subr.mxu0 0.0
    %299 = vmatpush1.msra.mxu0 0.0
    %300 = vmatprep.subr.mxu0 0.0
    %301 = vmatpush1.msra.mxu0 0.0
    %302 = vmatprep.subr.mxu0 0.0
    %303 = vmatpush1.msra.mxu0 0.0
    %304 = vmatprep.subr.mxu0 0.0
    %305 = vmatpush1.msra.mxu0 0.0
    %306 = vmatprep.subr.mxu0 0.0
    %307 = vmatpush1.msra.mxu0 0.0
    %308 = vmatprep.subr.mxu0 0.0
    %309 = vmatpush1.msra.mxu0 0.0
    %310 = vmatprep.subr.mxu0 0.0
    %311 = vmatpush1.msra.mxu0 0.0
    %312 = vmatprep.subr.mxu0 0.0
    %313 = vmatpush1.msra.mxu0 0.0
    %314 = vmatprep.subr.mxu0 0.0
    %315 = vmatpush1.msra.mxu0 0.0
    %316 = vmatprep.mubr.f32.mxu0 0.0
    %317 = vmatmul.mubr.f32.gmra.mrb[0].mxu0 %v62
    %v318 = vpop.f32.mrb[0].mxu0
    %v319 = vadd.f32 %v172, %v318
    %v320 = vpop.f32.mrb[0].mxu0
    %v321 = vadd.f32 %v176, %v320
    %322 = vdwg.mxu0
    %s323 = scalar_lea.vmem %s4, 1
    %v324 = vld [vmem:[%s323] ss:$8 sm:$0xf]
    %s325 = scalar_lea.vmem %s4, 2
    %v326 = vld [vmem:[%s325] ss:$8 sm:$0xf]
    %v327 = vadd.f32 %v248, %v250
    %v328 = vadd.f32 %v327, %v319
    %v329 = vadd.f32 %v328, %v321
    %330 = vadd.xlane.f32.xlu0 %v329
    %v331 = vpop.xlane.xlu0 %330
    %v332 = vmul.f32 %v248, %v248
    %v333 = vmul.f32 %v250, %v250
    %v334 = vmul.f32 %v319, %v319
    %v335 = vmul.f32 %v321, %v321
    %v336 = vadd.f32 %v332, %v333
    %v337 = vadd.f32 %v336, %v334
    %v338 = vadd.f32 %v337, %v335
    %339 = vadd.xlane.f32.xlu0 %v338
    %v340 = vpop.xlane.xlu0 %339
    %v341 = vmul.f32 %v331, 0.0025
    %v342 = vmul.f32 %v340, 0.0025
    %v343 = vmul.f32 %v341, %v341
    %v344 = vsub.f32 %v342, %v343
    %v345 = vadd.f32 %v344, 1e-05
    %v346 = vrsqrt.pop %v345
    %v347 = vsub.f32 %v248, %v341
    %v348 = vsub.f32 %v250, %v341
    %v349 = vsub.f32 %v319, %v341
    %v350 = vsub.f32 %v321, %v341
    %v351 = vmul.f32 %v347, %v346
    %v352 = vmul.f32 %v348, %v346
    %v353 = vmul.f32 %v349, %v346
    %v354 = vmul.f32 %v350, %v346
    %v356 = vlaneseq
    %v357 = vshrl.u32 %v356, 7
    %v358 = vsub.s32 0, %v357
    %v359 = vrot.slane %v324, %v358
    %v360 = vlaneseq
    %v361 = vshrl.u32 %v360, 7
    %v362 = vsub.s32 1, %v361
    %v363 = vrot.slane %v324, %v362
    %v364 = vlaneseq
    %v365 = vshrl.u32 %v364, 7
    %v366 = vsub.s32 2, %v365
    %v367 = vrot.slane %v324, %v366
    %v368 = vlaneseq
    %v369 = vshrl.u32 %v368, 7
    %v370 = vsub.s32 3, %v369
    %v371 = vrot.slane %v324, %v370
    %v376 = vmul.f32 %v351, %v359
    %v377 = vmul.f32 %v352, %v363
    %v378 = vmul.f32 %v353, %v367
    %v379 = vmul.f32 %v354, %v371
    %v381 = vlaneseq
    %v382 = vshrl.u32 %v381, 7
    %v383 = vsub.s32 0, %v382
    %v384 = vrot.slane %v326, %v383
    %v385 = vlaneseq
    %v386 = vshrl.u32 %v385, 7
    %v387 = vsub.s32 1, %v386
    %v388 = vrot.slane %v326, %v387
    %v389 = vlaneseq
    %v390 = vshrl.u32 %v389, 7
    %v391 = vsub.s32 2, %v390
    %v392 = vrot.slane %v326, %v391
    %v393 = vlaneseq
    %v394 = vshrl.u32 %v393, 7
    %v395 = vsub.s32 3, %v394
    %v396 = vrot.slane %v326, %v395
    %v401 = vadd.f32 %v376, %v384
    %v402 = vadd.f32 %v377, %v388
    %v403 = vadd.f32 %v378, %v392
    %v404 = vadd.f32 %v379, %v396
    %v405 = vmax.f32 %v401, 0.0
    %v406 = vmax.f32 %v402, 0.0
    %v407 = vmax.f32 %v403, 0.0
    %v408 = vmax.f32 %v404, 0.0
    %v409 = vld [vmem:[#allocation5] sm:$0xff]
    %v410 = vld [vmem:[#allocation5 + $0x8] sm:$0xff]
    %v411 = vld [vmem:[#allocation5 + $0x10] sm:$0xff]
    %v412 = vld [vmem:[#allocation5 + $0x18] sm:$0xff]
    %v413 = vld [vmem:[#allocation5 + $0x20] sm:$0xff]
    %v414 = vld [vmem:[#allocation5 + $0x28] sm:$0xff]
    %v415 = vld [vmem:[#allocation5 + $0x30] sm:$0xff]
    %v416 = vld [vmem:[#allocation5 + $0x38] sm:$0xff]
    %v417 = vld [vmem:[#allocation5 + $0x40] sm:$0xff]
    %v418 = vld [vmem:[#allocation5 + $0x48] sm:$0xff]
    %v419 = vld [vmem:[#allocation5 + $0x50] sm:$0xff]
    %v420 = vld [vmem:[#allocation5 + $0x58] sm:$0xff]
    %v421 = vld [vmem:[#allocation5 + $0x60] sm:$0xff]
    %v422 = vld [vmem:[#allocation5 + $0x68] sm:$0xff]
    %v423 = vld [vmem:[#allocation5 + $0x70] sm:$0xff]
    %v424 = vld [vmem:[#allocation5 + $0x78] sm:$0xff]
    %v425 = vld [vmem:[#allocation5 + $0x80] sm:$0xff]
    %v426 = vld [vmem:[#allocation5 + $0x88] sm:$0xff]
    %v427 = vld [vmem:[#allocation5 + $0x90] sm:$0xff]
    %v428 = vld [vmem:[#allocation5 + $0x98] sm:$0xff]
    %v429 = vld [vmem:[#allocation5 + $0xa0] sm:$0xff]
    %v430 = vld [vmem:[#allocation5 + $0xa8] sm:$0xff]
    %v431 = vld [vmem:[#allocation5 + $0xb0] sm:$0xff]
    %v432 = vld [vmem:[#allocation5 + $0xb8] sm:$0xff]
    %v433 = vld [vmem:[#allocation5 + $0xc0] sm:$0xff]
    %v434 = vld [vmem:[#allocation5 + $0xc8] sm:$0xff]
    %v435 = vld [vmem:[#allocation5 + $0xd0] sm:$0xff]
    %v436 = vld [vmem:[#allocation5 + $0xd8] sm:$0xff]
    %v437 = vld [vmem:[#allocation5 + $0xe0] sm:$0xff]
    %v438 = vld [vmem:[#allocation5 + $0xe8] sm:$0xff]
    %v439 = vld [vmem:[#allocation5 + $0xf0] sm:$0xff]
    %v440 = vld [vmem:[#allocation5 + $0xf8] sm:$0xff]
    %v441 = vld [vmem:[#allocation5 + $0x100] sm:$0xff]
    %v442 = vld [vmem:[#allocation5 + $0x108] sm:$0xff]
    %v443 = vld [vmem:[#allocation5 + $0x110] sm:$0xff]
    %v444 = vld [vmem:[#allocation5 + $0x118] sm:$0xff]
    %v445 = vld [vmem:[#allocation5 + $0x120] sm:$0xff]
    %v446 = vld [vmem:[#allocation5 + $0x128] sm:$0xff]
    %v447 = vld [vmem:[#allocation5 + $0x130] sm:$0xff]
    %v448 = vld [vmem:[#allocation5 + $0x138] sm:$0xff]
    %v449 = vld [vmem:[#allocation5 + $0x140] sm:$0xff]
    %v450 = vld [vmem:[#allocation5 + $0x148] sm:$0xff]
    %v451 = vld [vmem:[#allocation5 + $0x150] sm:$0xff]
    %v452 = vld [vmem:[#allocation5 + $0x158] sm:$0xff]
    %v453 = vld [vmem:[#allocation5 + $0x160] sm:$0xff]
    %v454 = vld [vmem:[#allocation5 + $0x168] sm:$0xff]
    %v455 = vld [vmem:[#allocation5 + $0x170] sm:$0xff]
    %v456 = vld [vmem:[#allocation5 + $0x178] sm:$0xff]
    %v457 = vld [vmem:[#allocation5 + $0x180] sm:$0xff]
    %v458 = vld [vmem:[#allocation5 + $0x188] sm:$0xff]
    %v459 = vld [vmem:[#allocation5 + $0x190] sm:$0xff]
    %v460 = vld [vmem:[#allocation5 + $0x198] sm:$0xff]
    %v461 = vld [vmem:[#allocation5 + $0x1a0] sm:$0xff]
    %v462 = vld [vmem:[#allocation5 + $0x1a8] sm:$0xff]
    %v463 = vld [vmem:[#allocation5 + $0x1b0] sm:$0xff]
    %v464 = vld [vmem:[#allocation5 + $0x1b8] sm:$0xff]
    %v465 = vld [vmem:[#allocation5 + $0x1c0] sm:$0xff]
    %v466 = vld [vmem:[#allocation5 + $0x1c8] sm:$0xff]
    %v467 = vld [vmem:[#allocation5 + $0x1d0] sm:$0xff]
    %v468 = vld [vmem:[#allocation5 + $0x1d8] sm:$0xff]
    %v469 = vld [vmem:[#allocation5 + $0x1e0] sm:$0xff]
    %v470 = vld [vmem:[#allocation5 + $0x1e8] sm:$0xff]
    %v471 = vld [vmem:[#allocation5 + $0x1f0] sm:$0xff]
    %v472 = vld [vmem:[#allocation5 + $0x1f8] sm:$0xff]
    %v473 = vld [vmem:[#allocation5 + $0x200] sm:$0xff]
    %v474 = vld [vmem:[#allocation5 + $0x208] sm:$0xff]
    %v475 = vld [vmem:[#allocation5 + $0x210] sm:$0xff]
    %v476 = vld [vmem:[#allocation5 + $0x218] sm:$0xff]
    %v477 = vld [vmem:[#allocation5 + $0x220] sm:$0xff]
    %v478 = vld [vmem:[#allocation5 + $0x228] sm:$0xff]
    %v479 = vld [vmem:[#allocation5 + $0x230] sm:$0xff]
    %v480 = vld [vmem:[#allocation5 + $0x238] sm:$0xff]
    %v481 = vld [vmem:[#allocation5 + $0x240] sm:$0xff]
    %v482 = vld [vmem:[#allocation5 + $0x248] sm:$0xff]
    %v483 = vld [vmem:[#allocation5 + $0x250] sm:$0xff]
    %v484 = vld [vmem:[#allocation5 + $0x258] sm:$0xff]
    %v485 = vld [vmem:[#allocation5 + $0x260] sm:$0xff]
    %v486 = vld [vmem:[#allocation5 + $0x268] sm:$0xff]
    %v487 = vld [vmem:[#allocation5 + $0x270] sm:$0xff]
    %v488 = vld [vmem:[#allocation5 + $0x278] sm:$0xff]
    %v489 = vld [vmem:[#allocation5 + $0x280] sm:$0xff]
    %v490 = vld [vmem:[#allocation5 + $0x288] sm:$0xff]
    %v491 = vld [vmem:[#allocation5 + $0x290] sm:$0xff]
    %v492 = vld [vmem:[#allocation5 + $0x298] sm:$0xff]
    %v493 = vld [vmem:[#allocation5 + $0x2a0] sm:$0xff]
    %v494 = vld [vmem:[#allocation5 + $0x2a8] sm:$0xff]
    %v495 = vld [vmem:[#allocation5 + $0x2b0] sm:$0xff]
    %v496 = vld [vmem:[#allocation5 + $0x2b8] sm:$0xff]
    %v497 = vld [vmem:[#allocation5 + $0x2c0] sm:$0xff]
    %v498 = vld [vmem:[#allocation5 + $0x2c8] sm:$0xff]
    %v499 = vld [vmem:[#allocation5 + $0x2d0] sm:$0xff]
    %v500 = vld [vmem:[#allocation5 + $0x2d8] sm:$0xff]
    %v501 = vld [vmem:[#allocation5 + $0x2e0] sm:$0xff]
    %v502 = vld [vmem:[#allocation5 + $0x2e8] sm:$0xff]
    %v503 = vld [vmem:[#allocation5 + $0x2f0] sm:$0xff]
    %v504 = vld [vmem:[#allocation5 + $0x2f8] sm:$0xff]
    %v505 = vld [vmem:[#allocation5 + $0x300] sm:$0xff]
    %v506 = vld [vmem:[#allocation5 + $0x308] sm:$0xff]
    %v507 = vld [vmem:[#allocation5 + $0x310] sm:$0xff]
    %v508 = vld [vmem:[#allocation5 + $0x318] sm:$0xff]
    %v509 = vld [vmem:[#allocation5 + $0x320] sm:$0xff]
    %v510 = vld [vmem:[#allocation5 + $0x328] sm:$0xff]
    %v511 = vld [vmem:[#allocation5 + $0x330] sm:$0xff]
    %v512 = vld [vmem:[#allocation5 + $0x338] sm:$0xff]
    %v513 = vld [vmem:[#allocation5 + $0x340] sm:$0xff]
    %v514 = vld [vmem:[#allocation5 + $0x348] sm:$0xff]
    %v515 = vld [vmem:[#allocation5 + $0x350] sm:$0xff]
    %v516 = vld [vmem:[#allocation5 + $0x358] sm:$0xff]
    %v517 = vld [vmem:[#allocation5 + $0x360] sm:$0xff]
    %v518 = vld [vmem:[#allocation5 + $0x368] sm:$0xff]
    %v519 = vld [vmem:[#allocation5 + $0x370] sm:$0xff]
    %v520 = vld [vmem:[#allocation5 + $0x378] sm:$0xff]
    %v521 = vld [vmem:[#allocation5 + $0x380] sm:$0xff]
    %v522 = vld [vmem:[#allocation5 + $0x388] sm:$0xff]
    %v523 = vld [vmem:[#allocation5 + $0x390] sm:$0xff]
    %v524 = vld [vmem:[#allocation5 + $0x398] sm:$0xff]
    %v525 = vld [vmem:[#allocation5 + $0x3a0] sm:$0xff]
    %v526 = vld [vmem:[#allocation5 + $0x3a8] sm:$0xff]
    %v527 = vld [vmem:[#allocation5 + $0x3b0] sm:$0xff]
    %v528 = vld [vmem:[#allocation5 + $0x3b8] sm:$0xff]
    %v529 = vld [vmem:[#allocation5 + $0x3c0] sm:$0xff]
    %v530 = vld [vmem:[#allocation5 + $0x3c8] sm:$0xff]
    %v531 = vld [vmem:[#allocation5 + $0x3d0] sm:$0xff]
    %v532 = vld [vmem:[#allocation5 + $0x3d8] sm:$0xff]
    %v533 = vld [vmem:[#allocation5 + $0x3e0] sm:$0xff]
    %v534 = vld [vmem:[#allocation5 + $0x3e8] sm:$0xff]
    %v535 = vld [vmem:[#allocation5 + $0x3f0] sm:$0xff]
    %v536 = vld [vmem:[#allocation5 + $0x3f8] sm:$0xff]
    %v537 = vunpack.c.l.bf16 %v409
    %v538 = vunpack.c.h.bf16 %v409
    %v539 = vunpack.c.l.bf16 %v410
    %v540 = vunpack.c.h.bf16 %v410
    %v541 = vunpack.c.l.bf16 %v411
    %v542 = vunpack.c.h.bf16 %v411
    %v543 = vunpack.c.l.bf16 %v412
    %v544 = vunpack.c.h.bf16 %v412
    %v545 = vunpack.c.l.bf16 %v413
    %v546 = vunpack.c.h.bf16 %v413
    %v547 = vunpack.c.l.bf16 %v414
    %v548 = vunpack.c.h.bf16 %v414
    %v549 = vunpack.c.l.bf16 %v415
    %v550 = vunpack.c.h.bf16 %v415
    %v551 = vunpack.c.l.bf16 %v416
    %v552 = vunpack.c.h.bf16 %v416
    %v553 = vunpack.c.l.bf16 %v417
    %v554 = vunpack.c.h.bf16 %v417
    %v555 = vunpack.c.l.bf16 %v418
    %v556 = vunpack.c.h.bf16 %v418
    %v557 = vunpack.c.l.bf16 %v419
    %v558 = vunpack.c.h.bf16 %v419
    %v559 = vunpack.c.l.bf16 %v420
    %v560 = vunpack.c.h.bf16 %v420
    %v561 = vunpack.c.l.bf16 %v421
    %v562 = vunpack.c.h.bf16 %v421
    %v563 = vunpack.c.l.bf16 %v422
    %v564 = vunpack.c.h.bf16 %v422
    %v565 = vunpack.c.l.bf16 %v423
    %v566 = vunpack.c.h.bf16 %v423
    %v567 = vunpack.c.l.bf16 %v424
    %v568 = vunpack.c.h.bf16 %v424
    %v569 = vunpack.c.l.bf16 %v425
    %v570 = vunpack.c.h.bf16 %v425
    %v571 = vunpack.c.l.bf16 %v426
    %v572 = vunpack.c.h.bf16 %v426
    %v573 = vunpack.c.l.bf16 %v427
    %v574 = vunpack.c.h.bf16 %v427
    %v575 = vunpack.c.l.bf16 %v428
    %v576 = vunpack.c.h.bf16 %v428
    %v577 = vunpack.c.l.bf16 %v429
    %v578 = vunpack.c.h.bf16 %v429
    %v579 = vunpack.c.l.bf16 %v430
    %v580 = vunpack.c.h.bf16 %v430
    %v581 = vunpack.c.l.bf16 %v431
    %v582 = vunpack.c.h.bf16 %v431
    %v583 = vunpack.c.l.bf16 %v432
    %v584 = vunpack.c.h.bf16 %v432
    %v585 = vunpack.c.l.bf16 %v433
    %v586 = vunpack.c.h.bf16 %v433
    %v587 = vunpack.c.l.bf16 %v434
    %v588 = vunpack.c.h.bf16 %v434
    %v589 = vunpack.c.l.bf16 %v435
    %v590 = vunpack.c.h.bf16 %v435
    %v591 = vunpack.c.l.bf16 %v436
    %v592 = vunpack.c.h.bf16 %v436
    %v593 = vunpack.c.l.bf16 %v437
    %v594 = vunpack.c.h.bf16 %v437
    %v595 = vunpack.c.l.bf16 %v438
    %v596 = vunpack.c.h.bf16 %v438
    %v597 = vunpack.c.l.bf16 %v439
    %v598 = vunpack.c.h.bf16 %v439
    %v599 = vunpack.c.l.bf16 %v440
    %v600 = vunpack.c.h.bf16 %v440
    %v601 = vunpack.c.l.bf16 %v441
    %v602 = vunpack.c.h.bf16 %v441
    %v603 = vunpack.c.l.bf16 %v442
    %v604 = vunpack.c.h.bf16 %v442
    %v605 = vunpack.c.l.bf16 %v443
    %v606 = vunpack.c.h.bf16 %v443
    %v607 = vunpack.c.l.bf16 %v444
    %v608 = vunpack.c.h.bf16 %v444
    %v609 = vunpack.c.l.bf16 %v445
    %v610 = vunpack.c.h.bf16 %v445
    %v611 = vunpack.c.l.bf16 %v446
    %v612 = vunpack.c.h.bf16 %v446
    %v613 = vunpack.c.l.bf16 %v447
    %v614 = vunpack.c.h.bf16 %v447
    %v615 = vunpack.c.l.bf16 %v448
    %v616 = vunpack.c.h.bf16 %v448
    %v617 = vunpack.c.l.bf16 %v449
    %v618 = vunpack.c.h.bf16 %v449
    %v619 = vunpack.c.l.bf16 %v450
    %v620 = vunpack.c.h.bf16 %v450
    %v621 = vunpack.c.l.bf16 %v451
    %v622 = vunpack.c.h.bf16 %v451
    %v623 = vunpack.c.l.bf16 %v452
    %v624 = vunpack.c.h.bf16 %v452
    %v625 = vunpack.c.l.bf16 %v453
    %v626 = vunpack.c.h.bf16 %v453
    %v627 = vunpack.c.l.bf16 %v454
    %v628 = vunpack.c.h.bf16 %v454
    %v629 = vunpack.c.l.bf16 %v455
    %v630 = vunpack.c.h.bf16 %v455
    %v631 = vunpack.c.l.bf16 %v456
    %v632 = vunpack.c.h.bf16 %v456
    %v633 = vunpack.c.l.bf16 %v457
    %v634 = vunpack.c.h.bf16 %v457
    %v635 = vunpack.c.l.bf16 %v458
    %v636 = vunpack.c.h.bf16 %v458
    %v637 = vunpack.c.l.bf16 %v459
    %v638 = vunpack.c.h.bf16 %v459
    %v639 = vunpack.c.l.bf16 %v460
    %v640 = vunpack.c.h.bf16 %v460
    %v641 = vunpack.c.l.bf16 %v461
    %v642 = vunpack.c.h.bf16 %v461
    %v643 = vunpack.c.l.bf16 %v462
    %v644 = vunpack.c.h.bf16 %v462
    %v645 = vunpack.c.l.bf16 %v463
    %v646 = vunpack.c.h.bf16 %v463
    %v647 = vunpack.c.l.bf16 %v464
    %v648 = vunpack.c.h.bf16 %v464
    %v649 = vunpack.c.l.bf16 %v465
    %v650 = vunpack.c.h.bf16 %v465
    %v651 = vunpack.c.l.bf16 %v466
    %v652 = vunpack.c.h.bf16 %v466
    %v653 = vunpack.c.l.bf16 %v467
    %v654 = vunpack.c.h.bf16 %v467
    %v655 = vunpack.c.l.bf16 %v468
    %v656 = vunpack.c.h.bf16 %v468
    %v657 = vunpack.c.l.bf16 %v469
    %v658 = vunpack.c.h.bf16 %v469
    %v659 = vunpack.c.l.bf16 %v470
    %v660 = vunpack.c.h.bf16 %v470
    %v661 = vunpack.c.l.bf16 %v471
    %v662 = vunpack.c.h.bf16 %v471
    %v663 = vunpack.c.l.bf16 %v472
    %v664 = vunpack.c.h.bf16 %v472
    %v665 = vunpack.c.l.bf16 %v473
    %v666 = vunpack.c.h.bf16 %v473
    %v667 = vunpack.c.l.bf16 %v474
    %v668 = vunpack.c.h.bf16 %v474
    %v669 = vunpack.c.l.bf16 %v475
    %v670 = vunpack.c.h.bf16 %v475
    %v671 = vunpack.c.l.bf16 %v476
    %v672 = vunpack.c.h.bf16 %v476
    %v673 = vunpack.c.l.bf16 %v477
    %v674 = vunpack.c.h.bf16 %v477
    %v675 = vunpack.c.l.bf16 %v478
    %v676 = vunpack.c.h.bf16 %v478
    %v677 = vunpack.c.l.bf16 %v479
    %v678 = vunpack.c.h.bf16 %v479
    %v679 = vunpack.c.l.bf16 %v480
    %v680 = vunpack.c.h.bf16 %v480
    %v681 = vunpack.c.l.bf16 %v481
    %v682 = vunpack.c.h.bf16 %v481
    %v683 = vunpack.c.l.bf16 %v482
    %v684 = vunpack.c.h.bf16 %v482
    %v685 = vunpack.c.l.bf16 %v483
    %v686 = vunpack.c.h.bf16 %v483
    %v687 = vunpack.c.l.bf16 %v484
    %v688 = vunpack.c.h.bf16 %v484
    %v689 = vunpack.c.l.bf16 %v485
    %v690 = vunpack.c.h.bf16 %v485
    %v691 = vunpack.c.l.bf16 %v486
    %v692 = vunpack.c.h.bf16 %v486
    %v693 = vunpack.c.l.bf16 %v487
    %v694 = vunpack.c.h.bf16 %v487
    %v695 = vunpack.c.l.bf16 %v488
    %v696 = vunpack.c.h.bf16 %v488
    %v697 = vunpack.c.l.bf16 %v489
    %v698 = vunpack.c.h.bf16 %v489
    %v699 = vunpack.c.l.bf16 %v490
    %v700 = vunpack.c.h.bf16 %v490
    %v701 = vunpack.c.l.bf16 %v491
    %v702 = vunpack.c.h.bf16 %v491
    %v703 = vunpack.c.l.bf16 %v492
    %v704 = vunpack.c.h.bf16 %v492
    %v705 = vunpack.c.l.bf16 %v493
    %v706 = vunpack.c.h.bf16 %v493
    %v707 = vunpack.c.l.bf16 %v494
    %v708 = vunpack.c.h.bf16 %v494
    %v709 = vunpack.c.l.bf16 %v495
    %v710 = vunpack.c.h.bf16 %v495
    %v711 = vunpack.c.l.bf16 %v496
    %v712 = vunpack.c.h.bf16 %v496
    %v713 = vunpack.c.l.bf16 %v497
    %v714 = vunpack.c.h.bf16 %v497
    %v715 = vunpack.c.l.bf16 %v498
    %v716 = vunpack.c.h.bf16 %v498
    %v717 = vunpack.c.l.bf16 %v499
    %v718 = vunpack.c.h.bf16 %v499
    %v719 = vunpack.c.l.bf16 %v500
    %v720 = vunpack.c.h.bf16 %v500
    %v721 = vunpack.c.l.bf16 %v501
    %v722 = vunpack.c.h.bf16 %v501
    %v723 = vunpack.c.l.bf16 %v502
    %v724 = vunpack.c.h.bf16 %v502
    %v725 = vunpack.c.l.bf16 %v503
    %v726 = vunpack.c.h.bf16 %v503
    %v727 = vunpack.c.l.bf16 %v504
    %v728 = vunpack.c.h.bf16 %v504
    %v729 = vunpack.c.l.bf16 %v505
    %v730 = vunpack.c.h.bf16 %v505
    %v731 = vunpack.c.l.bf16 %v506
    %v732 = vunpack.c.h.bf16 %v506
    %v733 = vunpack.c.l.bf16 %v507
    %v734 = vunpack.c.h.bf16 %v507
    %v735 = vunpack.c.l.bf16 %v508
    %v736 = vunpack.c.h.bf16 %v508
    %v737 = vunpack.c.l.bf16 %v509
    %v738 = vunpack.c.h.bf16 %v509
    %v739 = vunpack.c.l.bf16 %v510
    %v740 = vunpack.c.h.bf16 %v510
    %v741 = vunpack.c.l.bf16 %v511
    %v742 = vunpack.c.h.bf16 %v511
    %v743 = vunpack.c.l.bf16 %v512
    %v744 = vunpack.c.h.bf16 %v512
    %v745 = vunpack.c.l.bf16 %v513
    %v746 = vunpack.c.h.bf16 %v513
    %v747 = vunpack.c.l.bf16 %v514
    %v748 = vunpack.c.h.bf16 %v514
    %v749 = vunpack.c.l.bf16 %v515
    %v750 = vunpack.c.h.bf16 %v515
    %v751 = vunpack.c.l.bf16 %v516
    %v752 = vunpack.c.h.bf16 %v516
    %v753 = vunpack.c.l.bf16 %v517
    %v754 = vunpack.c.h.bf16 %v517
    %v755 = vunpack.c.l.bf16 %v518
    %v756 = vunpack.c.h.bf16 %v518
    %v757 = vunpack.c.l.bf16 %v519
    %v758 = vunpack.c.h.bf16 %v519
    %v759 = vunpack.c.l.bf16 %v520
    %v760 = vunpack.c.h.bf16 %v520
    %v761 = vunpack.c.l.bf16 %v521
    %v762 = vunpack.c.h.bf16 %v521
    %v763 = vunpack.c.l.bf16 %v522
    %v764 = vunpack.c.h.bf16 %v522
    %v765 = vunpack.c.l.bf16 %v523
    %v766 = vunpack.c.h.bf16 %v523
    %v767 = vunpack.c.l.bf16 %v524
    %v768 = vunpack.c.h.bf16 %v524
    %v769 = vunpack.c.l.bf16 %v525
    %v770 = vunpack.c.h.bf16 %v525
    %v771 = vunpack.c.l.bf16 %v526
    %v772 = vunpack.c.h.bf16 %v526
    %v773 = vunpack.c.l.bf16 %v527
    %v774 = vunpack.c.h.bf16 %v527
    %v775 = vunpack.c.l.bf16 %v528
    %v776 = vunpack.c.h.bf16 %v528
    %v777 = vunpack.c.l.bf16 %v529
    %v778 = vunpack.c.h.bf16 %v529
    %v779 = vunpack.c.l.bf16 %v530
    %v780 = vunpack.c.h.bf16 %v530
    %v781 = vunpack.c.l.bf16 %v531
    %v782 = vunpack.c.h.bf16 %v531
    %v783 = vunpack.c.l.bf16 %v532
    %v784 = vunpack.c.h.bf16 %v532
    %v785 = vunpack.c.l.bf16 %v533
    %v786 = vunpack.c.h.bf16 %v533
    %v787 = vunpack.c.l.bf16 %v534
    %v788 = vunpack.c.h.bf16 %v534
    %v789 = vunpack.c.l.bf16 %v535
    %v790 = vunpack.c.h.bf16 %v535
    %v791 = vunpack.c.l.bf16 %v536
    %v792 = vunpack.c.h.bf16 %v536
    %s793 = scalar_lea.vmem %s4, 3
    %v794 = vld [vmem:[%s793] ss:$8 sm:$0xf]
    %v796 = vlaneseq
    %v797 = vshrl.u32 %v796, 7
    %v798 = vsub.s32 0, %v797
    %v799 = vrot.slane %v794, %v798
    %v800 = vlaneseq
    %v801 = vshrl.u32 %v800, 7
    %v802 = vsub.s32 1, %v801
    %v803 = vrot.slane %v794, %v802
    %v804 = vlaneseq
    %v805 = vshrl.u32 %v804, 7
    %v806 = vsub.s32 2, %v805
    %v807 = vrot.slane %v794, %v806
    %v808 = vlaneseq
    %v809 = vshrl.u32 %v808, 7
    %v810 = vsub.s32 3, %v809
    %v811 = vrot.slane %v794, %v810
    %816 = vmatprep.subr.mxu0 %v538
    %817 = vmatpush1.msra.mxu0 %v537
    %818 = vmatprep.subr.mxu0 %v542
    %819 = vmatpush1.msra.mxu0 %v541
    %820 = vmatprep.subr.mxu0 %v546
    %821 = vmatpush1.msra.mxu0 %v545
    %822 = vmatprep.subr.mxu0 %v550
    %823 = vmatpush1.msra.mxu0 %v549
    %824 = vmatprep.subr.mxu0 %v554
    %825 = vmatpush1.msra.mxu0 %v553
    %826 = vmatprep.subr.mxu0 %v558
    %827 = vmatpush1.msra.mxu0 %v557
    %828 = vmatprep.subr.mxu0 %v562
    %829 = vmatpush1.msra.mxu0 %v561
    %830 = vmatprep.subr.mxu0 %v566
    %831 = vmatpush1.msra.mxu0 %v565
    %832 = vmatprep.subr.mxu0 %v570
    %833 = vmatpush1.msra.mxu0 %v569
    %834 = vmatprep.subr.mxu0 %v574
    %835 = vmatpush1.msra.mxu0 %v573
    %836 = vmatprep.subr.mxu0 %v578
    %837 = vmatpush1.msra.mxu0 %v577
    %838 = vmatprep.subr.mxu0 %v582
    %839 = vmatpush1.msra.mxu0 %v581
    %840 = vmatprep.subr.mxu0 %v586
    %841 = vmatpush1.msra.mxu0 %v585
    %842 = vmatprep.subr.mxu0 %v590
    %843 = vmatpush1.msra.mxu0 %v589
    %844 = vmatprep.subr.mxu0 %v594
    %845 = vmatpush1.msra.mxu0 %v593
    %846 = vmatprep.subr.mxu0 %v598
    %847 = vmatpush1.msra.mxu0 %v597
    %848 = vmatprep.subr.mxu0 %v602
    %849 = vmatpush1.msra.mxu0 %v601
    %850 = vmatprep.subr.mxu0 %v606
    %851 = vmatpush1.msra.mxu0 %v605
    %852 = vmatprep.subr.mxu0 %v610
    %853 = vmatpush1.msra.mxu0 %v609
    %854 = vmatprep.subr.mxu0 %v614
    %855 = vmatpush1.msra.mxu0 %v613
    %856 = vmatprep.subr.mxu0 %v618
    %857 = vmatpush1.msra.mxu0 %v617
    %858 = vmatprep.subr.mxu0 %v622
    %859 = vmatpush1.msra.mxu0 %v621
    %860 = vmatprep.subr.mxu0 %v626
    %861 = vmatpush1.msra.mxu0 %v625
    %862 = vmatprep.subr.mxu0 %v630
    %863 = vmatpush1.msra.mxu0 %v629
    %864 = vmatprep.subr.mxu0 %v634
    %865 = vmatpush1.msra.mxu0 %v633
    %866 = vmatprep.subr.mxu0 %v638
    %867 = vmatpush1.msra.mxu0 %v637
    %868 = vmatprep.subr.mxu0 %v642
    %869 = vmatpush1.msra.mxu0 %v641
    %870 = vmatprep.subr.mxu0 %v646
    %871 = vmatpush1.msra.mxu0 %v645
    %872 = vmatprep.subr.mxu0 %v650
    %873 = vmatpush1.msra.mxu0 %v649
    %874 = vmatprep.subr.mxu0 %v654
    %875 = vmatpush1.msra.mxu0 %v653
    %876 = vmatprep.subr.mxu0 %v658
    %877 = vmatpush1.msra.mxu0 %v657
    %878 = vmatprep.subr.mxu0 %v662
    %879 = vmatpush1.msra.mxu0 %v661
    %880 = vmatprep.mubr.f32.mxu0 %v406
    %881 = vmatmul.mubr.f32.gmra.mrb[0].mxu0 %v405
    %v882 = vpop.f32.mrb[0].mxu0
    %v883 = vadd.f32 %v799, %v882
    %v884 = vpop.f32.mrb[0].mxu0
    %v885 = vadd.f32 %v803, %v884
    %886 = vdwg.mxu0
    %887 = vmatprep.subr.mxu0 %v666
    %888 = vmatpush1.msra.mxu0 %v665
    %889 = vmatprep.subr.mxu0 %v670
    %890 = vmatpush1.msra.mxu0 %v669
    %891 = vmatprep.subr.mxu0 %v674
    %892 = vmatpush1.msra.mxu0 %v673
    %893 = vmatprep.subr.mxu0 %v678
    %894 = vmatpush1.msra.mxu0 %v677
    %895 = vmatprep.subr.mxu0 %v682
    %896 = vmatpush1.msra.mxu0 %v681
    %897 = vmatprep.subr.mxu0 %v686
    %898 = vmatpush1.msra.mxu0 %v685
    %899 = vmatprep.subr.mxu0 %v690
    %900 = vmatpush1.msra.mxu0 %v689
    %901 = vmatprep.subr.mxu0 %v694
    %902 = vmatpush1.msra.mxu0 %v693
    %903 = vmatprep.subr.mxu0 %v698
    %904 = vmatpush1.msra.mxu0 %v697
    %905 = vmatprep.subr.mxu0 %v702
    %906 = vmatpush1.msra.mxu0 %v701
    %907 = vmatprep.subr.mxu0 %v706
    %908 = vmatpush1.msra.mxu0 %v705
    %909 = vmatprep.subr.mxu0 %v710
    %910 = vmatpush1.msra.mxu0 %v709
    %911 = vmatprep.subr.mxu0 %v714
    %912 = vmatpush1.msra.mxu0 %v713
    %913 = vmatprep.subr.mxu0 %v718
    %914 = vmatpush1.msra.mxu0 %v717
    %915 = vmatprep.subr.mxu0 %v722
    %916 = vmatpush1.msra.mxu0 %v721
    %917 = vmatprep.subr.mxu0 %v726
    %918 = vmatpush1.msra.mxu0 %v725
    %919 = vmatprep.subr.mxu0 %v730
    %920 = vmatpush1.msra.mxu0 %v729
    %921 = vmatprep.subr.mxu0 %v734
    %922 = vmatpush1.msra.mxu0 %v733
    %923 = vmatprep.subr.mxu0 %v738
    %924 = vmatpush1.msra.mxu0 %v737
    %925 = vmatprep.subr.mxu0 %v742
    %926 = vmatpush1.msra.mxu0 %v741
    %927 = vmatprep.subr.mxu0 %v746
    %928 = vmatpush1.msra.mxu0 %v745
    %929 = vmatprep.subr.mxu0 %v750
    %930 = vmatpush1.msra.mxu0 %v749
    %931 = vmatprep.subr.mxu0 %v754
    %932 = vmatpush1.msra.mxu0 %v753
    %933 = vmatprep.subr.mxu0 %v758
    %934 = vmatpush1.msra.mxu0 %v757
    %935 = vmatprep.subr.mxu0 %v762
    %936 = vmatpush1.msra.mxu0 %v761
    %937 = vmatprep.subr.mxu0 %v766
    %938 = vmatpush1.msra.mxu0 %v765
    %939 = vmatprep.subr.mxu0 %v770
    %940 = vmatpush1.msra.mxu0 %v769
    %941 = vmatprep.subr.mxu0 %v774
    %942 = vmatpush1.msra.mxu0 %v773
    %943 = vmatprep.subr.mxu0 %v778
    %944 = vmatpush1.msra.mxu0 %v777
    %945 = vmatprep.subr.mxu0 %v782
    %946 = vmatpush1.msra.mxu0 %v781
    %947 = vmatprep.subr.mxu0 %v786
    %948 = vmatpush1.msra.mxu0 %v785
    %949 = vmatprep.subr.mxu0 %v790
    %950 = vmatpush1.msra.mxu0 %v789
    %951 = vmatprep.mubr.f32.mxu0 %v408
    %952 = vmatmul.mubr.f32.gmra.mrb[0].mxu0 %v407
    %v953 = vpop.f32.mrb[0].mxu0
    %v954 = vadd.f32 %v883, %v953
    %v955 = vpop.f32.mrb[0].mxu0
    %v956 = vadd.f32 %v885, %v955
    %957 = vdwg.mxu0
    %958 = vmatprep.subr.mxu0 %v540
    %959 = vmatpush1.msra.mxu0 %v539
    %960 = vmatprep.subr.mxu0 %v544
    %961 = vmatpush1.msra.mxu0 %v543
    %962 = vmatprep.subr.mxu0 %v548
    %963 = vmatpush1.msra.mxu0 %v547
    %964 = vmatprep.subr.mxu0 %v552
    %965 = vmatpush1.msra.mxu0 %v551
    %966 = vmatprep.subr.mxu0 %v556
    %967 = vmatpush1.msra.mxu0 %v555
    %968 = vmatprep.subr.mxu0 %v560
    %969 = vmatpush1.msra.mxu0 %v559
    %970 = vmatprep.subr.mxu0 %v564
    %971 = vmatpush1.msra.mxu0 %v563
    %972 = vmatprep.subr.mxu0 %v568
    %973 = vmatpush1.msra.mxu0 %v567
    %974 = vmatprep.subr.mxu0 %v572
    %975 = vmatpush1.msra.mxu0 %v571
    %976 = vmatprep.subr.mxu0 %v576
    %977 = vmatpush1.msra.mxu0 %v575
    %978 = vmatprep.subr.mxu0 %v580
    %979 = vmatpush1.msra.mxu0 %v579
    %980 = vmatprep.subr.mxu0 %v584
    %981 = vmatpush1.msra.mxu0 %v583
    %982 = vmatprep.subr.mxu0 %v588
    %983 = vmatpush1.msra.mxu0 %v587
    %984 = vmatprep.subr.mxu0 %v592
    %985 = vmatpush1.msra.mxu0 %v591
    %986 = vmatprep.subr.mxu0 %v596
    %987 = vmatpush1.msra.mxu0 %v595
    %988 = vmatprep.subr.mxu0 %v600
    %989 = vmatpush1.msra.mxu0 %v599
    %990 = vmatprep.subr.mxu0 %v604
    %991 = vmatpush1.msra.mxu0 %v603
    %992 = vmatprep.subr.mxu0 %v608
    %993 = vmatpush1.msra.mxu0 %v607
    %994 = vmatprep.subr.mxu0 %v612
    %995 = vmatpush1.msra.mxu0 %v611
    %996 = vmatprep.subr.mxu0 %v616
    %997 = vmatpush1.msra.mxu0 %v615
    %998 = vmatprep.subr.mxu0 %v620
    %999 = vmatpush1.msra.mxu0 %v619
    %1000 = vmatprep.subr.mxu0 %v624
    %1001 = vmatpush1.msra.mxu0 %v623
    %1002 = vmatprep.subr.mxu0 %v628
    %1003 = vmatpush1.msra.mxu0 %v627
    %1004 = vmatprep.subr.mxu0 %v632
    %1005 = vmatpush1.msra.mxu0 %v631
    %1006 = vmatprep.subr.mxu0 %v636
    %1007 = vmatpush1.msra.mxu0 %v635
    %1008 = vmatprep.subr.mxu0 %v640
    %1009 = vmatpush1.msra.mxu0 %v639
    %1010 = vmatprep.subr.mxu0 %v644
    %1011 = vmatpush1.msra.mxu0 %v643
    %1012 = vmatprep.subr.mxu0 %v648
    %1013 = vmatpush1.msra.mxu0 %v647
    %1014 = vmatprep.subr.mxu0 %v652
    %1015 = vmatpush1.msra.mxu0 %v651
    %1016 = vmatprep.subr.mxu0 %v656
    %1017 = vmatpush1.msra.mxu0 %v655
    %1018 = vmatprep.subr.mxu0 %v660
    %1019 = vmatpush1.msra.mxu0 %v659
    %1020 = vmatprep.subr.mxu0 %v664
    %1021 = vmatpush1.msra.mxu0 %v663
    %1022 = vmatprep.mubr.f32.mxu0 %v406
    %1023 = vmatmul.mubr.f32.gmra.mrb[0].mxu0 %v405
    %v1024 = vpop.f32.mrb[0].mxu0
    %v1025 = vadd.f32 %v807, %v1024
    %v1026 = vpop.f32.mrb[0].mxu0
    %v1027 = vadd.f32 %v811, %v1026
    %1028 = vdwg.mxu0
    %1029 = vmatprep.subr.mxu0 %v668
    %1030 = vmatpush1.msra.mxu0 %v667
    %1031 = vmatprep.subr.mxu0 %v672
    %1032 = vmatpush1.msra.mxu0 %v671
    %1033 = vmatprep.subr.mxu0 %v676
    %1034 = vmatpush1.msra.mxu0 %v675
    %1035 = vmatprep.subr.mxu0 %v680
    %1036 = vmatpush1.msra.mxu0 %v679
    %1037 = vmatprep.subr.mxu0 %v684
    %1038 = vmatpush1.msra.mxu0 %v683
    %1039 = vmatprep.subr.mxu0 %v688
    %1040 = vmatpush1.msra.mxu0 %v687
    %1041 = vmatprep.subr.mxu0 %v692
    %1042 = vmatpush1.msra.mxu0 %v691
    %1043 = vmatprep.subr.mxu0 %v696
    %1044 = vmatpush1.msra.mxu0 %v695
    %1045 = vmatprep.subr.mxu0 %v700
    %1046 = vmatpush1.msra.mxu0 %v699
    %1047 = vmatprep.subr.mxu0 %v704
    %1048 = vmatpush1.msra.mxu0 %v703
    %1049 = vmatprep.subr.mxu0 %v708
    %1050 = vmatpush1.msra.mxu0 %v707
    %1051 = vmatprep.subr.mxu0 %v712
    %1052 = vmatpush1.msra.mxu0 %v711
    %1053 = vmatprep.subr.mxu0 %v716
    %1054 = vmatpush1.msra.mxu0 %v715
    %1055 = vmatprep.subr.mxu0 %v720
    %1056 = vmatpush1.msra.mxu0 %v719
    %1057 = vmatprep.subr.mxu0 %v724
    %1058 = vmatpush1.msra.mxu0 %v723
    %1059 = vmatprep.subr.mxu0 %v728
    %1060 = vmatpush1.msra.mxu0 %v727
    %1061 = vmatprep.subr.mxu0 %v732
    %1062 = vmatpush1.msra.mxu0 %v731
    %1063 = vmatprep.subr.mxu0 %v736
    %1064 = vmatpush1.msra.mxu0 %v735
    %1065 = vmatprep.subr.mxu0 %v740
    %1066 = vmatpush1.msra.mxu0 %v739
    %1067 = vmatprep.subr.mxu0 %v744
    %1068 = vmatpush1.msra.mxu0 %v743
    %1069 = vmatprep.subr.mxu0 %v748
    %1070 = vmatpush1.msra.mxu0 %v747
    %1071 = vmatprep.subr.mxu0 %v752
    %1072 = vmatpush1.msra.mxu0 %v751
    %1073 = vmatprep.subr.mxu0 %v756
    %1074 = vmatpush1.msra.mxu0 %v755
    %1075 = vmatprep.subr.mxu0 %v760
    %1076 = vmatpush1.msra.mxu0 %v759
    %1077 = vmatprep.subr.mxu0 %v764
    %1078 = vmatpush1.msra.mxu0 %v763
    %1079 = vmatprep.subr.mxu0 %v768
    %1080 = vmatpush1.msra.mxu0 %v767
    %1081 = vmatprep.subr.mxu0 %v772
    %1082 = vmatpush1.msra.mxu0 %v771
    %1083 = vmatprep.subr.mxu0 %v776
    %1084 = vmatpush1.msra.mxu0 %v775
    %1085 = vmatprep.subr.mxu0 %v780
    %1086 = vmatpush1.msra.mxu0 %v779
    %1087 = vmatprep.subr.mxu0 %v784
    %1088 = vmatpush1.msra.mxu0 %v783
    %1089 = vmatprep.subr.mxu0 %v788
    %1090 = vmatpush1.msra.mxu0 %v787
    %1091 = vmatprep.subr.mxu0 %v792
    %1092 = vmatpush1.msra.mxu0 %v791
    %1093 = vmatprep.mubr.f32.mxu0 %v408
    %1094 = vmatmul.mubr.f32.gmra.mrb[0].mxu0 %v407
    %v1095 = vpop.f32.mrb[0].mxu0
    %v1096 = vadd.f32 %v1025, %v1095
    %v1097 = vpop.f32.mrb[0].mxu0
    %v1098 = vadd.f32 %v1027, %v1097
    %1099 = vdwg.mxu0
    %s1100 = scalar_lea.vmem %s4, 4
    %v1101 = vld [vmem:[%s1100] ss:$8 sm:$0xf]
    %s1102 = scalar_lea.vmem %s4, 5
    %v1103 = vld [vmem:[%s1102] ss:$8 sm:$0xf]
    %v1104 = vadd.f32 %v954, %v956
    %v1105 = vadd.f32 %v1104, %v1096
    %v1106 = vadd.f32 %v1105, %v1098
    %1107 = vadd.xlane.f32.xlu0 %v1106
    %v1108 = vpop.xlane.xlu0 %1107
    %v1109 = vmul.f32 %v954, %v954
    %v1110 = vmul.f32 %v956, %v956
    %v1111 = vmul.f32 %v1096, %v1096
    %v1112 = vmul.f32 %v1098, %v1098
    %v1113 = vadd.f32 %v1109, %v1110
    %v1114 = vadd.f32 %v1113, %v1111
    %v1115 = vadd.f32 %v1114, %v1112
    %1116 = vadd.xlane.f32.xlu0 %v1115
    %v1117 = vpop.xlane.xlu0 %1116
    %v1118 = vmul.f32 %v1108, 0.0033333334
    %v1119 = vmul.f32 %v1117, 0.0033333334
    %v1120 = vmul.f32 %v1118, %v1118
    %v1121 = vsub.f32 %v1119, %v1120
    %v1122 = vadd.f32 %v1121, 1e-05
    %v1123 = vrsqrt.pop %v1122
    %v1124 = vsub.f32 %v954, %v1118
    %v1125 = vsub.f32 %v956, %v1118
    %v1126 = vsub.f32 %v1096, %v1118
    %v1127 = vsub.f32 %v1098, %v1118
    %v1128 = vmul.f32 %v1124, %v1123
    %v1129 = vmul.f32 %v1125, %v1123
    %v1130 = vmul.f32 %v1126, %v1123
    %v1131 = vmul.f32 %v1127, %v1123
    %v1133 = vlaneseq
    %v1134 = vshrl.u32 %v1133, 7
    %v1135 = vsub.s32 0, %v1134
    %v1136 = vrot.slane %v1101, %v1135
    %v1137 = vlaneseq
    %v1138 = vshrl.u32 %v1137, 7
    %v1139 = vsub.s32 1, %v1138
    %v1140 = vrot.slane %v1101, %v1139
    %v1141 = vlaneseq
    %v1142 = vshrl.u32 %v1141, 7
    %v1143 = vsub.s32 2, %v1142
    %v1144 = vrot.slane %v1101, %v1143
    %v1145 = vlaneseq
    %v1146 = vshrl.u32 %v1145, 7
    %v1147 = vsub.s32 3, %v1146
    %v1148 = vrot.slane %v1101, %v1147
    %v1153 = vmul.f32 %v1128, %v1136
    %v1154 = vmul.f32 %v1129, %v1140
    %v1155 = vmul.f32 %v1130, %v1144
    %v1156 = vmul.f32 %v1131, %v1148
    %v1158 = vlaneseq
    %v1159 = vshrl.u32 %v1158, 7
    %v1160 = vsub.s32 0, %v1159
    %v1161 = vrot.slane %v1103, %v1160
    %v1162 = vlaneseq
    %v1163 = vshrl.u32 %v1162, 7
    %v1164 = vsub.s32 1, %v1163
    %v1165 = vrot.slane %v1103, %v1164
    %v1166 = vlaneseq
    %v1167 = vshrl.u32 %v1166, 7
    %v1168 = vsub.s32 2, %v1167
    %v1169 = vrot.slane %v1103, %v1168
    %v1170 = vlaneseq
    %v1171 = vshrl.u32 %v1170, 7
    %v1172 = vsub.s32 3, %v1171
    %v1173 = vrot.slane %v1103, %v1172
    %v1178 = vadd.f32 %v1153, %v1161
    %v1179 = vadd.f32 %v1154, %v1165
    %v1180 = vadd.f32 %v1155, %v1169
    %v1181 = vadd.f32 %v1156, %v1173
    %v1182 = vmax.f32 %v1178, 0.0
    %v1183 = vmax.f32 %v1179, 0.0
    %v1184 = vmax.f32 %v1180, 0.0
    %v1185 = vmax.f32 %v1181, 0.0
    %v1186 = vld [vmem:[#allocation7] sm:$0xf]
    %v1187 = vld [vmem:[#allocation7 + $0x4] sm:$0xf]
    %v1188 = vld [vmem:[#allocation7 + $0x8] sm:$0xf]
    %v1189 = vld [vmem:[#allocation7 + $0xc] sm:$0xf]
    %v1190 = vld [vmem:[#allocation7 + $0x10] sm:$0xf]
    %v1191 = vld [vmem:[#allocation7 + $0x14] sm:$0xf]
    %v1192 = vld [vmem:[#allocation7 + $0x18] sm:$0xf]
    %v1193 = vld [vmem:[#allocation7 + $0x1c] sm:$0xf]
    %v1194 = vld [vmem:[#allocation7 + $0x20] sm:$0xf]
    %v1195 = vld [vmem:[#allocation7 + $0x24] sm:$0xf]
    %v1196 = vld [vmem:[#allocation7 + $0x28] sm:$0xf]
    %v1197 = vld [vmem:[#allocation7 + $0x2c] sm:$0xf]
    %v1198 = vld [vmem:[#allocation7 + $0x30] sm:$0xf]
    %v1199 = vld [vmem:[#allocation7 + $0x34] sm:$0xf]
    %v1200 = vld [vmem:[#allocation7 + $0x38] sm:$0xf]
    %v1201 = vld [vmem:[#allocation7 + $0x3c] sm:$0xf]
    %v1202 = vld [vmem:[#allocation7 + $0x40] sm:$0xf]
    %v1203 = vld [vmem:[#allocation7 + $0x44] sm:$0xf]
    %v1204 = vld [vmem:[#allocation7 + $0x48] sm:$0xf]
    %v1205 = vld [vmem:[#allocation7 + $0x4c] sm:$0xf]
    %v1206 = vld [vmem:[#allocation7 + $0x50] sm:$0xf]
    %v1207 = vld [vmem:[#allocation7 + $0x54] sm:$0xf]
    %v1208 = vld [vmem:[#allocation7 + $0x58] sm:$0xf]
    %v1209 = vld [vmem:[#allocation7 + $0x5c] sm:$0xf]
    %v1210 = vld [vmem:[#allocation7 + $0x60] sm:$0xf]
    %v1211 = vld [vmem:[#allocation7 + $0x64] sm:$0xf]
    %v1212 = vld [vmem:[#allocation7 + $0x68] sm:$0xf]
    %v1213 = vld [vmem:[#allocation7 + $0x6c] sm:$0xf]
    %v1214 = vld [vmem:[#allocation7 + $0x70] sm:$0xf]
    %v1215 = vld [vmem:[#allocation7 + $0x74] sm:$0xf]
    %v1216 = vld [vmem:[#allocation7 + $0x78] sm:$0xf]
    %v1217 = vld [vmem:[#allocation7 + $0x7c] sm:$0xf]
    %v1218 = vld [vmem:[#allocation7 + $0x80] sm:$0xf]
    %v1219 = vld [vmem:[#allocation7 + $0x84] sm:$0xf]
    %v1220 = vld [vmem:[#allocation7 + $0x88] sm:$0xf]
    %v1221 = vld [vmem:[#allocation7 + $0x8c] sm:$0xf]
    %v1222 = vld [vmem:[#allocation7 + $0x90] sm:$0xf]
    %v1223 = vld [vmem:[#allocation7 + $0x94] sm:$0xf]
    %v1224 = vld [vmem:[#allocation7 + $0x98] sm:$0xf]
    %v1225 = vld [vmem:[#allocation7 + $0x9c] sm:$0xf]
    %v1226 = vld [vmem:[#allocation7 + $0xa0] sm:$0xf]
    %v1227 = vld [vmem:[#allocation7 + $0xa4] sm:$0xf]
    %v1228 = vld [vmem:[#allocation7 + $0xa8] sm:$0xf]
    %v1229 = vld [vmem:[#allocation7 + $0xac] sm:$0xf]
    %v1230 = vld [vmem:[#allocation7 + $0xb0] sm:$0xf]
    %v1231 = vld [vmem:[#allocation7 + $0xb4] sm:$0xf]
    %v1232 = vld [vmem:[#allocation7 + $0xb8] sm:$0xf]
    %v1233 = vld [vmem:[#allocation7 + $0xbc] sm:$0xf]
    %v1234 = vld [vmem:[#allocation7 + $0xc0] sm:$0xf]
    %v1235 = vld [vmem:[#allocation7 + $0xc4] sm:$0xf]
    %v1236 = vld [vmem:[#allocation7 + $0xc8] sm:$0xf]
    %v1237 = vld [vmem:[#allocation7 + $0xcc] sm:$0xf]
    %v1238 = vld [vmem:[#allocation7 + $0xd0] sm:$0xf]
    %v1239 = vld [vmem:[#allocation7 + $0xd4] sm:$0xf]
    %v1240 = vld [vmem:[#allocation7 + $0xd8] sm:$0xf]
    %v1241 = vld [vmem:[#allocation7 + $0xdc] sm:$0xf]
    %v1242 = vld [vmem:[#allocation7 + $0xe0] sm:$0xf]
    %v1243 = vld [vmem:[#allocation7 + $0xe4] sm:$0xf]
    %v1244 = vld [vmem:[#allocation7 + $0xe8] sm:$0xf]
    %v1245 = vld [vmem:[#allocation7 + $0xec] sm:$0xf]
    %v1246 = vld [vmem:[#allocation7 + $0xf0] sm:$0xf]
    %v1247 = vld [vmem:[#allocation7 + $0xf4] sm:$0xf]
    %v1248 = vld [vmem:[#allocation7 + $0xf8] sm:$0xf]
    %v1249 = vld [vmem:[#allocation7 + $0xfc] sm:$0xf]
    %v1250 = vunpack.c.l.bf16 %v1186
    %v1251 = vunpack.c.l.bf16 %v1187
    %v1252 = vunpack.c.l.bf16 %v1188
    %v1253 = vunpack.c.l.bf16 %v1189
    %v1254 = vunpack.c.l.bf16 %v1190
    %v1255 = vunpack.c.l.bf16 %v1191
    %v1256 = vunpack.c.l.bf16 %v1192
    %v1257 = vunpack.c.l.bf16 %v1193
    %v1258 = vunpack.c.l.bf16 %v1194
    %v1259 = vunpack.c.l.bf16 %v1195
    %v1260 = vunpack.c.l.bf16 %v1196
    %v1261 = vunpack.c.l.bf16 %v1197
    %v1262 = vunpack.c.l.bf16 %v1198
    %v1263 = vunpack.c.l.bf16 %v1199
    %v1264 = vunpack.c.l.bf16 %v1200
    %v1265 = vunpack.c.l.bf16 %v1201
    %v1266 = vunpack.c.l.bf16 %v1202
    %v1267 = vunpack.c.l.bf16 %v1203
    %v1268 = vunpack.c.l.bf16 %v1204
    %v1269 = vunpack.c.l.bf16 %v1205
    %v1270 = vunpack.c.l.bf16 %v1206
    %v1271 = vunpack.c.l.bf16 %v1207
    %v1272 = vunpack.c.l.bf16 %v1208
    %v1273 = vunpack.c.l.bf16 %v1209
    %v1274 = vunpack.c.l.bf16 %v1210
    %v1275 = vunpack.c.l.bf16 %v1211
    %v1276 = vunpack.c.l.bf16 %v1212
    %v1277 = vunpack.c.l.bf16 %v1213
    %v1278 = vunpack.c.l.bf16 %v1214
    %v1279 = vunpack.c.l.bf16 %v1215
    %v1280 = vunpack.c.l.bf16 %v1216
    %v1281 = vunpack.c.l.bf16 %v1217
    %v1282 = vunpack.c.l.bf16 %v1218
    %v1283 = vunpack.c.l.bf16 %v1219
    %v1284 = vunpack.c.l.bf16 %v1220
    %v1285 = vunpack.c.l.bf16 %v1221
    %v1286 = vunpack.c.l.bf16 %v1222
    %v1287 = vunpack.c.l.bf16 %v1223
    %v1288 = vunpack.c.l.bf16 %v1224
    %v1289 = vunpack.c.l.bf16 %v1225
    %v1290 = vunpack.c.l.bf16 %v1226
    %v1291 = vunpack.c.l.bf16 %v1227
    %v1292 = vunpack.c.l.bf16 %v1228
    %v1293 = vunpack.c.l.bf16 %v1229
    %v1294 = vunpack.c.l.bf16 %v1230
    %v1295 = vunpack.c.l.bf16 %v1231
    %v1296 = vunpack.c.l.bf16 %v1232
    %v1297 = vunpack.c.l.bf16 %v1233
    %v1298 = vunpack.c.l.bf16 %v1234
    %v1299 = vunpack.c.l.bf16 %v1235
    %v1300 = vunpack.c.l.bf16 %v1236
    %v1301 = vunpack.c.l.bf16 %v1237
    %v1302 = vunpack.c.l.bf16 %v1238
    %v1303 = vunpack.c.l.bf16 %v1239
    %v1304 = vunpack.c.l.bf16 %v1240
    %v1305 = vunpack.c.l.bf16 %v1241
    %v1306 = vunpack.c.l.bf16 %v1242
    %v1307 = vunpack.c.l.bf16 %v1243
    %v1308 = vunpack.c.l.bf16 %v1244
    %v1309 = vunpack.c.l.bf16 %v1245
    %v1310 = vunpack.c.l.bf16 %v1246
    %v1311 = vunpack.c.l.bf16 %v1247
    %v1312 = vunpack.c.l.bf16 %v1248
    %v1313 = vunpack.c.l.bf16 %v1249
    %v1314 = vld [vmem:[%s4 + $0x6] ss:$0 sm:$0xff]
    %1315 = vmatprep.subr.mxu0 0.0
    %1316 = vmatpush1.msra.mxu0 %v1250
    %1317 = vmatprep.subr.mxu0 0.0
    %1318 = vmatpush1.msra.mxu0 %v1251
    %1319 = vmatprep.subr.mxu0 0.0
    %1320 = vmatpush1.msra.mxu0 %v1252
    %1321 = vmatprep.subr.mxu0 0.0
    %1322 = vmatpush1.msra.mxu0 %v1253
    %1323 = vmatprep.subr.mxu0 0.0
    %1324 = vmatpush1.msra.mxu0 %v1254
    %1325 = vmatprep.subr.mxu0 0.0
    %1326 = vmatpush1.msra.mxu0 %v1255
    %1327 = vmatprep.subr.mxu0 0.0
    %1328 = vmatpush1.msra.mxu0 %v1256
    %1329 = vmatprep.subr.mxu0 0.0
    %1330 = vmatpush1.msra.mxu0 %v1257
    %1331 = vmatprep.subr.mxu0 0.0
    %1332 = vmatpush1.msra.mxu0 %v1258
    %1333 = vmatprep.subr.mxu0 0.0
    %1334 = vmatpush1.msra.mxu0 %v1259
    %1335 = vmatprep.subr.mxu0 0.0
    %1336 = vmatpush1.msra.mxu0 %v1260
    %1337 = vmatprep.subr.mxu0 0.0
    %1338 = vmatpush1.msra.mxu0 %v1261
    %1339 = vmatprep.subr.mxu0 0.0
    %1340 = vmatpush1.msra.mxu0 %v1262
    %1341 = vmatprep.subr.mxu0 0.0
    %1342 = vmatpush1.msra.mxu0 %v1263
    %1343 = vmatprep.subr.mxu0 0.0
    %1344 = vmatpush1.msra.mxu0 %v1264
    %1345 = vmatprep.subr.mxu0 0.0
    %1346 = vmatpush1.msra.mxu0 %v1265
    %1347 = vmatprep.subr.mxu0 0.0
    %1348 = vmatpush1.msra.mxu0 %v1266
    %1349 = vmatprep.subr.mxu0 0.0
    %1350 = vmatpush1.msra.mxu0 %v1267
    %1351 = vmatprep.subr.mxu0 0.0
    %1352 = vmatpush1.msra.mxu0 %v1268
    %1353 = vmatprep.subr.mxu0 0.0
    %1354 = vmatpush1.msra.mxu0 %v1269
    %1355 = vmatprep.subr.mxu0 0.0
    %1356 = vmatpush1.msra.mxu0 %v1270
    %1357 = vmatprep.subr.mxu0 0.0
    %1358 = vmatpush1.msra.mxu0 %v1271
    %1359 = vmatprep.subr.mxu0 0.0
    %1360 = vmatpush1.msra.mxu0 %v1272
    %1361 = vmatprep.subr.mxu0 0.0
    %1362 = vmatpush1.msra.mxu0 %v1273
    %1363 = vmatprep.subr.mxu0 0.0
    %1364 = vmatpush1.msra.mxu0 %v1274
    %1365 = vmatprep.subr.mxu0 0.0
    %1366 = vmatpush1.msra.mxu0 %v1275
    %1367 = vmatprep.subr.mxu0 0.0
    %1368 = vmatpush1.msra.mxu0 %v1276
    %1369 = vmatprep.subr.mxu0 0.0
    %1370 = vmatpush1.msra.mxu0 %v1277
    %1371 = vmatprep.subr.mxu0 0.0
    %1372 = vmatpush1.msra.mxu0 %v1278
    %1373 = vmatprep.subr.mxu0 0.0
    %1374 = vmatpush1.msra.mxu0 %v1279
    %1375 = vmatprep.subr.mxu0 0.0
    %1376 = vmatpush1.msra.mxu0 %v1280
    %1377 = vmatprep.subr.mxu0 0.0
    %1378 = vmatpush1.msra.mxu0 %v1281
    %1379 = vmatprep.mubr.f32.mxu0 %v1183
    %1380 = vmatmul.mubr.f32.gmra.mrb[0].mxu0 %v1182
    %v1381 = vpop.f32.mrb[0].mxu0
    %v1382 = vadd.f32 %v1314, %v1381
    %v1383 = vpop.f32.mrb[0].mxu0
    %1384 = vdwg.mxu0
    %1385 = vmatprep.subr.mxu0 0.0
    %1386 = vmatpush1.msra.mxu0 %v1282
    %1387 = vmatprep.subr.mxu0 0.0
    %1388 = vmatpush1.msra.mxu0 %v1283
    %1389 = vmatprep.subr.mxu0 0.0
    %1390 = vmatpush1.msra.mxu0 %v1284
    %1391 = vmatprep.subr.mxu0 0.0
    %1392 = vmatpush1.msra.mxu0 %v1285
    %1393 = vmatprep.subr.mxu0 0.0
    %1394 = vmatpush1.msra.mxu0 %v1286
    %1395 = vmatprep.subr.mxu0 0.0
    %1396 = vmatpush1.msra.mxu0 %v1287
    %1397 = vmatprep.subr.mxu0 0.0
    %1398 = vmatpush1.msra.mxu0 %v1288
    %1399 = vmatprep.subr.mxu0 0.0
    %1400 = vmatpush1.msra.mxu0 %v1289
    %1401 = vmatprep.subr.mxu0 0.0
    %1402 = vmatpush1.msra.mxu0 %v1290
    %1403 = vmatprep.subr.mxu0 0.0
    %1404 = vmatpush1.msra.mxu0 %v1291
    %1405 = vmatprep.subr.mxu0 0.0
    %1406 = vmatpush1.msra.mxu0 %v1292
    %1407 = vmatprep.subr.mxu0 0.0
    %1408 = vmatpush1.msra.mxu0 %v1293
    %1409 = vmatprep.subr.mxu0 0.0
    %1410 = vmatpush1.msra.mxu0 %v1294
    %1411 = vmatprep.subr.mxu0 0.0
    %1412 = vmatpush1.msra.mxu0 %v1295
    %1413 = vmatprep.subr.mxu0 0.0
    %1414 = vmatpush1.msra.mxu0 %v1296
    %1415 = vmatprep.subr.mxu0 0.0
    %1416 = vmatpush1.msra.mxu0 %v1297
    %1417 = vmatprep.subr.mxu0 0.0
    %1418 = vmatpush1.msra.mxu0 %v1298
    %1419 = vmatprep.subr.mxu0 0.0
    %1420 = vmatpush1.msra.mxu0 %v1299
    %1421 = vmatprep.subr.mxu0 0.0
    %1422 = vmatpush1.msra.mxu0 %v1300
    %1423 = vmatprep.subr.mxu0 0.0
    %1424 = vmatpush1.msra.mxu0 %v1301
    %1425 = vmatprep.subr.mxu0 0.0
    %1426 = vmatpush1.msra.mxu0 %v1302
    %1427 = vmatprep.subr.mxu0 0.0
    %1428 = vmatpush1.msra.mxu0 %v1303
    %1429 = vmatprep.subr.mxu0 0.0
    %1430 = vmatpush1.msra.mxu0 %v1304
    %1431 = vmatprep.subr.mxu0 0.0
    %1432 = vmatpush1.msra.mxu0 %v1305
    %1433 = vmatprep.subr.mxu0 0.0
    %1434 = vmatpush1.msra.mxu0 %v1306
    %1435 = vmatprep.subr.mxu0 0.0
    %1436 = vmatpush1.msra.mxu0 %v1307
    %1437 = vmatprep.subr.mxu0 0.0
    %1438 = vmatpush1.msra.mxu0 %v1308
    %1439 = vmatprep.subr.mxu0 0.0
    %1440 = vmatpush1.msra.mxu0 %v1309
    %1441 = vmatprep.subr.mxu0 0.0
    %1442 = vmatpush1.msra.mxu0 %v1310
    %1443 = vmatprep.subr.mxu0 0.0
    %1444 = vmatpush1.msra.mxu0 %v1311
    %1445 = vmatprep.subr.mxu0 0.0
    %1446 = vmatpush1.msra.mxu0 %v1312
    %1447 = vmatprep.subr.mxu0 0.0
    %1448 = vmatpush1.msra.mxu0 %v1313
    %1449 = vmatprep.mubr.f32.mxu0 %v1185
    %1450 = vmatmul.mubr.f32.gmra.mrb[0].mxu0 %v1184
    %v1451 = vpop.f32.mrb[0].mxu0
    %v1452 = vadd.f32 %v1382, %v1451
    %v1453 = vpop.f32.mrb[0].mxu0
    %1454 = vdwg.mxu0
    %v1455 = vtanh.pop %v1452
    %1456 = vst [vmem:[#allocation8] sm:$0xff] %v1455
    // Predicated region
    $region34: #{actor_forward.1} parent=1 // pred_check
      _
    $region35: #{actor_forward.1} parent=1 // pred_check_branch
      %1458 = sbr.rel (0) target = $region37
    $region36: #{actor_forward.1} parent=1 // pred_region
      %s1460 = ssub.s32 128, 128
      %1461 = vsyncadd [#allocation4], %s1460
      %s1463 = sshll.u32 [#allocation8], 4
      %s1464 = int_to_ptr.vmem [resolvable:$true] %s1463
      %1466 = dma.vmem_to_hbm [thread:$0]  %s1464, 128, %s5, [#allocation4]
    $region37: #{actor_forward.1} parent=1 // pred_fallthru
      _
    // Predicated region
    $region38: #{actor_forward.1} parent=1 // pred_check
      _
    $region39: #{actor_forward.1} parent=1 // pred_check_branch
      %1468 = sbr.rel (0) target = $region41
    $region40: #{actor_forward.1} parent=1 // pred_region
      %1469 = dma.done [#allocation4], 128
    $region41: #{actor_forward.1} parent=1 // pred_fallthru
      _
    %1470 = vsyncpa [#allocation3], 1
    %1471 = vsyncpa [#allocation6], 1
    %1472 = vsyncpa [#allocation4], 1

</llo_original>
